<compile_context>
chip_gen: v7x
topology: tpu7x:2x2x1
jax: 0.10.0
libtpu: 0.0.40
codegen_flags: <defaults>
</compile_context>

<pallas_src>
import jax
import jax.numpy as jnp
from jax import lax
from jax.experimental import pallas as pl
from jax.experimental.pallas import tpu as pltpu

BN_EPS = 1e-5


# ---------------------------------------------------------------------------
# Fused kernel
# ---------------------------------------------------------------------------
def _bottleneck_kernel(x_ref, xt_ref, xb_ref,
                       w1_ref, b1_ref,
                       w2_ref, b2_ref,
                       w3_ref, b3_ref,
                       o_ref, y1p_ref):
    # Block shapes:
    #   x_ref  : (1, tH, W, Cin)     main row slab (also the residual)
    #   xt_ref : (1, 1,  W, Cin)     row above the slab (clamped at the top)
    #   xb_ref : (1, 1,  W, Cin)     row below the slab (clamped at the bottom)
    #   w1_ref : (Cin, P)            1x1 conv1 weight (BN scale folded in)
    #   w2_ref : (9P, P)             3x3 conv2 weight, ((ky*3+kx)*ci, co)
    #   w3_ref : (P, Cout)           1x1 conv3 weight (BN scale folded in)
    #   b*_ref : (1, C) f32          folded BN bias
    #   o_ref  : (1, tH, W, Cout)
    #   y1p_ref: (tH+2, W+2, P)      zero-padded conv1 output (VMEM scratch,
    #                                compute dtype)
    _, tH, W, cin = x_ref.shape
    P = w1_ref.shape[1]
    cout = o_ref.shape[-1]
    r = pl.program_id(1)
    n_r = pl.num_programs(1)
    sdt = y1p_ref.dtype

    w1 = w1_ref[...]
    b1 = b1_ref[...]

    def conv1(x2d):
        # 1x1 conv == channel matmul (f32 accumulation) + bias + ReLU,
        # written back in the scratch/compute dtype.
        acc = jnp.dot(x2d, w1, preferred_element_type=jnp.float32)
        return jnp.maximum(acc + b1, 0.0).astype(sdt)

    # ---- conv1 on the main rows --------------------------------------------
    # Full-width, sublane-aligned row stores: the two W-pad columns are
    # concatenated in registers, so no separate scratch zeroing is needed.
    y1_main = conv1(x_ref[...].reshape(tH * W, cin)).reshape(tH, W, P)
    zc_main = jnp.zeros((tH, 1, P), sdt)
    y1p_ref[1:tH + 1, :, :] = jnp.concatenate([zc_main, y1_main, zc_main],
                                              axis=1)

    zrow = jnp.zeros((1, W + 2, P), sdt)
    zc1 = jnp.zeros((1, 1, P), sdt)

    # ---- conv1 on the halo rows (zero pad rows at image boundaries) --------
    @pl.when(r == 0)
    def _():
        y1p_ref[0:1, :, :] = zrow

    @pl.when(r > 0)
    def _():
        top = conv1(xt_ref[...].reshape(W, cin)).reshape(1, W, P)
        y1p_ref[0:1, :, :] = jnp.concatenate([zc1, top, zc1], axis=1)

    @pl.when(r == n_r - 1)
    def _():
        y1p_ref[tH + 1:tH + 2, :, :] = zrow

    @pl.when(r < n_r - 1)
    def _():
        bot = conv1(xb_ref[...].reshape(W, cin)).reshape(1, W, P)
        y1p_ref[tH + 1:tH + 2, :, :] = jnp.concatenate([zc1, bot, zc1], axis=1)

    # ---- conv2: 3x3, stride 1 as ONE matmul with K = 9*P (single im2col) ----
    parts = []
    for dy in range(3):                                      # static unroll
        for dx in range(3):
            parts.append(y1p_ref[dy:dy + tH, dx:dx + W, :])  # (tH, W, P)
    patch = jnp.concatenate(parts, axis=-1).reshape(tH * W, 9 * P)
    acc2 = jnp.dot(patch, w2_ref[...], preferred_element_type=jnp.float32)
    y2 = jnp.maximum(acc2 + b2_ref[...], 0.0)

    # ---- conv3 + bias + residual + ReLU (f32 epilogue) ----------------------
    acc3 = jnp.dot(y2.astype(w3_ref.dtype), w3_ref[...],
                   preferred_element_type=jnp.float32)
    res = x_ref[...].reshape(tH * W, cin).astype(jnp.float32)
    out = acc3 + b3_ref[...] + res
    o_ref[...] = jnp.maximum(out, 0.0).reshape(1, tH, W, cout).astype(o_ref.dtype)


# ---------------------------------------------------------------------------
# Wrapper
# ---------------------------------------------------------------------------
def _itemsize(dt):
    return jnp.dtype(dt).itemsize


def _step_vmem_bytes(tH, W, cin, cout, P, x_dt, out_dt, sc_dt, w_dt):
    b = 2 * tH * W * cin * _itemsize(x_dt)           # main slab (double-buffered)
    b += 2 * 2 * W * cin * _itemsize(x_dt)           # halo rows
    b += 2 * tH * W * cout * _itemsize(out_dt)       # output slab (double-buffered)
    b += (tH + 2) * (W + 2) * P * _itemsize(sc_dt)   # conv1 scratch
    b += 2 * (cin * P + 9 * P * P + P * cout) * _itemsize(w_dt)   # weights
    b += 2 * (2 * P + cout) * 4                      # biases (f32)
    # in-kernel temporaries: im2col patch, conv2/conv3 f32 accumulators
    b += tH * W * 9 * P * _itemsize(sc_dt)
    b += tH * W * P * 4
    b += tH * W * cout * 4
    return b


def _pick_row_tile(H, N, target, fits):
    best = None
    for t in range(1, H + 1):
        if H % t:
            continue
        if t > max(1, target):
            continue
        if N == 1 and H >= 2 and H // t < 2:
            continue          # keep >=2 grid steps so both v7x TCs get work
        if not fits(t):
            continue
        best = t
    return best if best is not None else 1


def bottleneck_forward(x_nchw, p, *, row_tile=64, compute_dtype=None,
                       vmem_budget_bytes=40 * 1024 * 1024,
                       vmem_limit_bytes=64 * 1024 * 1024):
    """Bottleneck forward.  x_nchw: (N, Cin, H, W); returns (N, Cin, H, W).

    compute_dtype: optional dtype (e.g. jnp.bfloat16) for the activations,
    weights and the conv1 scratch — recommended on ALL generations (v5e/v6e/
    v7x); matmul accumulation and the bias/ReLU/residual epilogue stay f32.
    """
    x = jnp.transpose(x_nchw, (0, 2, 3, 1))                  # NCHW -> NHWC
    N, H, W, cin = x.shape
    P = p["w1"].shape[1]
    cout = p["w3"].shape[1]
    assert cout == cin, "downsample=None requires inplanes == planes*expansion"

    # Fold BN scales into the conv weights (exact, done in f32); keep biases.
    w1 = p["w1"] * p["s1"]                                   # (Cin, P)
    w2 = (p["w2"] * p["s2"][0]).reshape(9 * P, P)            # HWIO -> (9P, P)
    w3 = p["w3"] * p["s3"]                                   # (P, Cout)
    b1, b2, b3 = p["b1"], p["b2"], p["b3"]                   # (1, C) f32

    if compute_dtype is not None:
        x = x.astype(compute_dtype)
        w1 = w1.astype(compute_dtype)
        w2 = w2.astype(compute_dtype)
        w3 = w3.astype(compute_dtype)
    sc_dt = compute_dtype if compute_dtype is not None else jnp.float32
    out_dt = x.dtype

    fits = lambda t: _step_vmem_bytes(t, W, cin, cout, P, x.dtype, out_dt,
                                      sc_dt, w1.dtype) <= vmem_budget_bytes
    tH = _pick_row_tile(H, N, row_tile, fits)
    n_rows = H // tH

    out = pl.pallas_call(
        _bottleneck_kernel,
        out_shape=jax.ShapeDtypeStruct((N, H, W, cout), out_dt),
        grid=(N, n_rows),
        in_specs=[
            # main row slab (also used as the residual)
            pl.BlockSpec((1, tH, W, cin), lambda n, r: (n, r, 0, 0)),
            # 1-row halo above (block size 1 along H => block index == row)
            pl.BlockSpec((1, 1, W, cin),
                         lambda n, r: (n, jnp.maximum(r * tH - 1, 0), 0, 0)),
            # 1-row halo below
            pl.BlockSpec((1, 1, W, cin),
                         lambda n, r: (n, jnp.minimum((r + 1) * tH, H - 1), 0, 0)),
            # weights / folded-BN biases (grid-invariant -> stay resident)
            pl.BlockSpec((cin, P), lambda n, r: (0, 0)),
            pl.BlockSpec((1, P), lambda n, r: (0, 0)),
            pl.BlockSpec((9 * P, P), lambda n, r: (0, 0)),
            pl.BlockSpec((1, P), lambda n, r: (0, 0)),
            pl.BlockSpec((P, cout), lambda n, r: (0, 0)),
            pl.BlockSpec((1, cout), lambda n, r: (0, 0)),
        ],
        out_specs=pl.BlockSpec((1, tH, W, cout), lambda n, r: (n, r, 0, 0)),
        scratch_shapes=[pltpu.VMEM((tH + 2, W + 2, P), sc_dt)],
        compiler_params=pltpu.CompilerParams(
            dimension_semantics=("parallel", "parallel"),
            vmem_limit_bytes=vmem_limit_bytes),
    )(x, x, x, w1, b1, w2, b2, w3, b3)
    return jnp.transpose(out, (0, 3, 1, 2))                  # NHWC -> NCHW


# ---------------------------------------------------------------------------
# Parameter construction + pure-JAX reference
# ---------------------------------------------------------------------------
def _fold_bn(gamma, beta, mean, var):
    scale = gamma / jnp.sqrt(var + BN_EPS)
    bias = beta - mean * scale
    return scale[None, :], bias[None, :]


def make_params(key, inplanes, planes):
    expansion = 4
    ks = jax.random.split(key, 16)
    f32 = jnp.float32

    def bn_params(k, c):
        k1, k2, k3, k4 = jax.random.split(k, 4)
        gamma = 1.0 + 0.1 * jax.random.normal(k1, (c,), f32)
        beta = 0.1 * jax.random.normal(k2, (c,), f32)
        mean = 0.1 * jax.random.normal(k3, (c,), f32)
        var = 0.5 + jax.random.uniform(k4, (c,), f32)
        return _fold_bn(gamma, beta, mean, var)

    w1 = 0.1 * jax.random.normal(ks[0], (inplanes, planes), f32)          # 1x1
    w2 = 0.1 * jax.random.normal(ks[1], (3, 3, planes, planes), f32)      # HWIO
    w3 = 0.1 * jax.random.normal(ks[2], (planes, planes * expansion), f32)
    s1, b1 = bn_params(ks[3], planes)
    s2, b2 = bn_params(ks[4], planes)
    s3, b3 = bn_params(ks[5], planes * expansion)
    return dict(w1=w1, w2=w2, w3=w3, s1=s1, b1=b1, s2=s2, b2=b2, s3=s3, b3=b3)


def reference_forward(x_nchw, p):
    x = jnp.transpose(x_nchw, (0, 2, 3, 1))
    dn = ("NHWC", "HWIO", "NHWC")
    y = lax.conv_general_dilated(x, p["w1"][None, None], (1, 1), "VALID",
                                 dimension_numbers=dn)
    y = jnp.maximum(y * p["s1"][0] + p["b1"][0], 0.0)
    y = lax.conv_general_dilated(y, p["w2"], (1, 1), ((1, 1), (1, 1)),
                                 dimension_numbers=dn)
    y = jnp.maximum(y * p["s2"][0] + p["b2"][0], 0.0)
    y = lax.conv_general_dilated(y, p["w3"][None, None], (1, 1), "VALID",
                                 dimension_numbers=dn)
    y = y * p["s3"][0] + p["b3"][0]
    y = jnp.maximum(y + x, 0.0)
    return jnp.transpose(y, (0, 3, 1, 2))


if __name__ == "__main__":
    key = jax.random.PRNGKey(0)
    k_x, k_p = jax.random.split(key)

    N, H, W = 2, 16, 16
    planes = 4
    inplanes = planes * 4  # downsample=None => inplanes must equal planes*expansion

    x = jax.random.normal(k_x, (N, inplanes, H, W), jnp.float32)  # NCHW input
    params = make_params(k_p, inplanes, planes)
    ref = reference_forward(x, params)

    # f32, multi-row-tile grid (exercises the halo-row path: grid = (2, 2)).
    out = jax.block_until_ready(bottleneck_forward(x, params, row_tile=8))
    assert out.shape == (N, inplanes, H, W)
    assert jnp.allclose(out, ref, atol=1e-4, rtol=1e-4), "mismatch (row_tile=8)"

    # f32, one row tile per image (boundary padding rows from the zrow path).
    out_full = jax.block_until_ready(bottleneck_forward(x, params, row_tile=16))
    assert jnp.allclose(out_full, ref, atol=1e-4, rtol=1e-4), "mismatch (row_tile=16)"

    # f32, default row-tile / VMEM-budget auto-selection path.
    out_auto = jax.block_until_ready(bottleneck_forward(x, params))
    assert jnp.allclose(out_auto, ref, atol=1e-4, rtol=1e-4), "mismatch (auto)"

    # bf16 activations + weights + scratch (production mode), f32 epilogue.
    out_bf16 = jax.block_until_ready(
        bottleneck_forward(x, params, row_tile=8, compute_dtype=jnp.bfloat16))
    assert jnp.allclose(out_bf16.astype(jnp.float32), ref,
                        atol=1e-1, rtol=1e-1), "mismatch (bf16)"

    print("KERNEL_OK")
</pallas_src>

<mosaic_0001>
module attributes {stable_mosaic.version = 11 : i64} {
  func.func @_bottleneck_kernel(%arg0: i32, %arg1: i32, %arg2: memref<1x8x16x16xf32, #tpu.memory_space<vmem>>, %arg3: memref<1x1x16x16xf32, #tpu.memory_space<vmem>>, %arg4: memref<1x1x16x16xf32, #tpu.memory_space<vmem>>, %arg5: memref<16x4xf32, #tpu.memory_space<vmem>>, %arg6: memref<1x4xf32, #tpu.memory_space<vmem>>, %arg7: memref<36x4xf32, #tpu.memory_space<vmem>>, %arg8: memref<1x4xf32, #tpu.memory_space<vmem>>, %arg9: memref<4x16xf32, #tpu.memory_space<vmem>>, %arg10: memref<1x16xf32, #tpu.memory_space<vmem>>, %arg11: memref<1x8x16x16xf32, #tpu.memory_space<vmem>>, %arg12: memref<10x18x4xf32, #tpu.memory_space<vmem>>) attributes {dimension_semantics = [#tpu.dimension_semantics<parallel>, #tpu.dimension_semantics<parallel>], iteration_bounds = array<i64: 2, 2>, scalar_prefetch = 0 : i64, scratch_operands = 1 : i64, tpu.core_type = #tpu.core_type<tc>, window_params = [{transform_indices = @transform_0, window_bounds = array<i64: 1, 8, 16, 16>}, {transform_indices = @transform_1, window_bounds = array<i64: 1, 1, 16, 16>}, {transform_indices = @transform_2, window_bounds = array<i64: 1, 1, 16, 16>}, {pipeline_mode = #tpu.pipeline_mode<synchronous>, transform_indices = @transform_3, window_bounds = array<i64: 16, 4>}, {pipeline_mode = #tpu.pipeline_mode<synchronous>, transform_indices = @transform_4, window_bounds = array<i64: 1, 4>}, {pipeline_mode = #tpu.pipeline_mode<synchronous>, transform_indices = @transform_5, window_bounds = array<i64: 36, 4>}, {pipeline_mode = #tpu.pipeline_mode<synchronous>, transform_indices = @transform_6, window_bounds = array<i64: 1, 4>}, {pipeline_mode = #tpu.pipeline_mode<synchronous>, transform_indices = @transform_7, window_bounds = array<i64: 4, 16>}, {pipeline_mode = #tpu.pipeline_mode<synchronous>, transform_indices = @transform_8, window_bounds = array<i64: 1, 16>}, {transform_indices = @transform_9, window_bounds = array<i64: 1, 8, 16, 16>}]} {
    %c0 = arith.constant 0 : index
    %c0_0 = arith.constant 0 : index
    %0 = vector.load %arg5[%c0, %c0_0] : memref<16x4xf32, #tpu.memory_space<vmem>>, vector<16x4xf32>
    %c0_1 = arith.constant 0 : index
    %c0_2 = arith.constant 0 : index
    %1 = vector.load %arg6[%c0_1, %c0_2] : memref<1x4xf32, #tpu.memory_space<vmem>>, vector<1x4xf32>
    %c0_3 = arith.constant 0 : index
    %c0_4 = arith.constant 0 : index
    %c0_5 = arith.constant 0 : index
    %c0_6 = arith.constant 0 : index
    %2 = vector.load %arg2[%c0_3, %c0_4, %c0_5, %c0_6] : memref<1x8x16x16xf32, #tpu.memory_space<vmem>>, vector<1x8x16x16xf32>
    %3 = vector.shape_cast %2 : vector<1x8x16x16xf32> to vector<128x16xf32>
    %cst = arith.constant dense<0.000000e+00> : vector<128x4xf32>
    %4 = tpu.matmul %3, %0, %cst {dimension_numbers = #tpu.dot_dimension_numbers<[1], [0], [0], [1], [0, 0, 1, 1], [], []>} : vector<128x16xf32>, vector<16x4xf32>, vector<128x4xf32> -> vector<128x4xf32>
    %5 = vector.broadcast %1 : vector<1x4xf32> to vector<128x4xf32>
    %6 = arith.addf %4, %5 : vector<128x4xf32>
    %cst_7 = arith.constant 0.000000e+00 : f32
    %7 = vector.broadcast %cst_7 : f32 to vector<128x4xf32>
    %8 = arith.maximumf %6, %7 : vector<128x4xf32>
    %9 = vector.shape_cast %8 : vector<128x4xf32> to vector<8x16x4xf32>
    %cst_8 = arith.constant 0.000000e+00 : f32
    %10 = vector.broadcast %cst_8 : f32 to vector<8x1x4xf32>
    %11 = tpu.concatenate %10, %9, %10 in 1 : vector<8x1x4xf32>, vector<8x16x4xf32>, vector<8x1x4xf32> -> vector<8x18x4xf32>
    %c1 = arith.constant 1 : index
    %c0_9 = arith.constant 0 : index
    %c0_10 = arith.constant 0 : index
    %12 = vector.load %arg12[%c1, %c0_9, %c0_10] : memref<10x18x4xf32, #tpu.memory_space<vmem>>, vector<8x18x4xf32>
    tpu.vector_store %arg12[%c1, %c0_9, %c0_10], %11 {strides = array<i32>} : memref<10x18x4xf32, #tpu.memory_space<vmem>>, vector<8x18x4xf32>,
    %cst_11 = arith.constant 0.000000e+00 : f32
    %13 = vector.broadcast %cst_11 : f32 to vector<1x18x4xf32>
    %cst_12 = arith.constant 0.000000e+00 : f32
    %14 = vector.broadcast %cst_12 : f32 to vector<1x1x4xf32>
    %c0_i32 = arith.constant 0 : i32
    %15 = arith.cmpi eq, %arg1, %c0_i32 : i32
    %16 = arith.extui %15 : i1 to i32
    %c0_i32_13 = arith.constant 0 : i32
    %17 = arith.cmpi ne, %16, %c0_i32_13 : i32
    scf.if %17 {
      %c0_65 = arith.constant 0 : index
      %c0_66 = arith.constant 0 : index
      %c0_67 = arith.constant 0 : index
      %57 = vector.load %arg12[%c0_65, %c0_66, %c0_67] : memref<10x18x4xf32, #tpu.memory_space<vmem>>, vector<1x18x4xf32>
      tpu.vector_store %arg12[%c0_65, %c0_66, %c0_67], %13 {strides = array<i32>} : memref<10x18x4xf32, #tpu.memory_space<vmem>>, vector<1x18x4xf32>,
    } else {
    }
    %c0_i32_14 = arith.constant 0 : i32
    %18 = arith.cmpi sgt, %arg1, %c0_i32_14 : i32
    %19 = arith.extui %18 : i1 to i32
    %c0_i32_15 = arith.constant 0 : i32
    %20 = arith.cmpi ne, %19, %c0_i32_15 : i32
    scf.if %20 {
      %c0_65 = arith.constant 0 : index
      %c0_66 = arith.constant 0 : index
      %c0_67 = arith.constant 0 : index
      %c0_68 = arith.constant 0 : index
      %57 = vector.load %arg3[%c0_65, %c0_66, %c0_67, %c0_68] : memref<1x1x16x16xf32, #tpu.memory_space<vmem>>, vector<1x1x16x16xf32>
      %58 = vector.shape_cast %57 : vector<1x1x16x16xf32> to vector<16x16xf32>
      %cst_69 = arith.constant dense<0.000000e+00> : vector<16x4xf32>
      %59 = tpu.matmul %58, %0, %cst_69 {dimension_numbers = #tpu.dot_dimension_numbers<[1], [0], [0], [1], [0, 0, 1, 1], [], []>} : vector<16x16xf32>, vector<16x4xf32>, vector<16x4xf32> -> vector<16x4xf32>
      %60 = vector.broadcast %1 : vector<1x4xf32> to vector<16x4xf32>
      %61 = arith.addf %59, %60 : vector<16x4xf32>
      %cst_70 = arith.constant 0.000000e+00 : f32
      %62 = vector.broadcast %cst_70 : f32 to vector<16x4xf32>
      %63 = arith.maximumf %61, %62 : vector<16x4xf32>
      %64 = vector.shape_cast %63 : vector<16x4xf32> to vector<1x16x4xf32>
      %65 = tpu.concatenate %14, %64, %14 in 1 : vector<1x1x4xf32>, vector<1x16x4xf32>, vector<1x1x4xf32> -> vector<1x18x4xf32>
      %c0_71 = arith.constant 0 : index
      %c0_72 = arith.constant 0 : index
      %c0_73 = arith.constant 0 : index
      %66 = vector.load %arg12[%c0_71, %c0_72, %c0_73] : memref<10x18x4xf32, #tpu.memory_space<vmem>>, vector<1x18x4xf32>
      tpu.vector_store %arg12[%c0_71, %c0_72, %c0_73], %65 {strides = array<i32>} : memref<10x18x4xf32, #tpu.memory_space<vmem>>, vector<1x18x4xf32>,
    } else {
    }
    %c1_i32 = arith.constant 1 : i32
    %21 = arith.cmpi eq, %arg1, %c1_i32 : i32
    %22 = arith.extui %21 : i1 to i32
    %c0_i32_16 = arith.constant 0 : i32
    %23 = arith.cmpi ne, %22, %c0_i32_16 : i32
    scf.if %23 {
      %c9 = arith.constant 9 : index
      %c0_65 = arith.constant 0 : index
      %c0_66 = arith.constant 0 : index
      %57 = vector.load %arg12[%c9, %c0_65, %c0_66] : memref<10x18x4xf32, #tpu.memory_space<vmem>>, vector<1x18x4xf32>
      tpu.vector_store %arg12[%c9, %c0_65, %c0_66], %13 {strides = array<i32>} : memref<10x18x4xf32, #tpu.memory_space<vmem>>, vector<1x18x4xf32>,
    } else {
    }
    %c1_i32_17 = arith.constant 1 : i32
    %24 = arith.cmpi slt, %arg1, %c1_i32_17 : i32
    %25 = arith.extui %24 : i1 to i32
    %c0_i32_18 = arith.constant 0 : i32
    %26 = arith.cmpi ne, %25, %c0_i32_18 : i32
    scf.if %26 {
      %c0_65 = arith.constant 0 : index
      %c0_66 = arith.constant 0 : index
      %c0_67 = arith.constant 0 : index
      %c0_68 = arith.constant 0 : index
      %57 = vector.load %arg4[%c0_65, %c0_66, %c0_67, %c0_68] : memref<1x1x16x16xf32, #tpu.memory_space<vmem>>, vector<1x1x16x16xf32>
      %58 = vector.shape_cast %57 : vector<1x1x16x16xf32> to vector<16x16xf32>
      %cst_69 = arith.constant dense<0.000000e+00> : vector<16x4xf32>
      %59 = tpu.matmul %58, %0, %cst_69 {dimension_numbers = #tpu.dot_dimension_numbers<[1], [0], [0], [1], [0, 0, 1, 1], [], []>} : vector<16x16xf32>, vector<16x4xf32>, vector<16x4xf32> -> vector<16x4xf32>
      %60 = vector.broadcast %1 : vector<1x4xf32> to vector<16x4xf32>
      %61 = arith.addf %59, %60 : vector<16x4xf32>
      %cst_70 = arith.constant 0.000000e+00 : f32
      %62 = vector.broadcast %cst_70 : f32 to vector<16x4xf32>
      %63 = arith.maximumf %61, %62 : vector<16x4xf32>
      %64 = vector.shape_cast %63 : vector<16x4xf32> to vector<1x16x4xf32>
      %65 = tpu.concatenate %14, %64, %14 in 1 : vector<1x1x4xf32>, vector<1x16x4xf32>, vector<1x1x4xf32> -> vector<1x18x4xf32>
      %c9 = arith.constant 9 : index
      %c0_71 = arith.constant 0 : index
      %c0_72 = arith.constant 0 : index
      %66 = vector.load %arg12[%c9, %c0_71, %c0_72] : memref<10x18x4xf32, #tpu.memory_space<vmem>>, vector<1x18x4xf32>
      tpu.vector_store %arg12[%c9, %c0_71, %c0_72], %65 {strides = array<i32>} : memref<10x18x4xf32, #tpu.memory_space<vmem>>, vector<1x18x4xf32>,
    } else {
    }
    %c0_19 = arith.constant 0 : index
    %c0_20 = arith.constant 0 : index
    %c0_21 = arith.constant 0 : index
    %27 = vector.load %arg12[%c0_19, %c0_20, %c0_21] : memref<10x18x4xf32, #tpu.memory_space<vmem>>, vector<8x16x4xf32>
    %c0_22 = arith.constant 0 : index
    %c1_23 = arith.constant 1 : index
    %c0_24 = arith.constant 0 : index
    %28 = vector.load %arg12[%c0_22, %c1_23, %c0_24] : memref<10x18x4xf32, #tpu.memory_space<vmem>>, vector<8x16x4xf32>
    %c0_25 = arith.constant 0 : index
    %c2 = arith.constant 2 : index
    %c0_26 = arith.constant 0 : index
    %29 = vector.load %arg12[%c0_25, %c2, %c0_26] : memref<10x18x4xf32, #tpu.memory_space<vmem>>, vector<8x16x4xf32>
    %c1_27 = arith.constant 1 : index
    %c0_28 = arith.constant 0 : index
    %c0_29 = arith.constant 0 : index
    %30 = vector.load %arg12[%c1_27, %c0_28, %c0_29] : memref<10x18x4xf32, #tpu.memory_space<vmem>>, vector<8x16x4xf32>
    %c1_30 = arith.constant 1 : index
    %c1_31 = arith.constant 1 : index
    %c0_32 = arith.constant 0 : index
    %31 = vector.load %arg12[%c1_30, %c1_31, %c0_32] : memref<10x18x4xf32, #tpu.memory_space<vmem>>, vector<8x16x4xf32>
    %c1_33 = arith.constant 1 : index
    %c2_34 = arith.constant 2 : index
    %c0_35 = arith.constant 0 : index
    %32 = vector.load %arg12[%c1_33, %c2_34, %c0_35] : memref<10x18x4xf32, #tpu.memory_space<vmem>>, vector<8x16x4xf32>
    %c2_36 = arith.constant 2 : index
    %c0_37 = arith.constant 0 : index
    %c0_38 = arith.constant 0 : index
    %33 = vector.load %arg12[%c2_36, %c0_37, %c0_38] : memref<10x18x4xf32, #tpu.memory_space<vmem>>, vector<8x16x4xf32>
    %c2_39 = arith.constant 2 : index
    %c1_40 = arith.constant 1 : index
    %c0_41 = arith.constant 0 : index
    %34 = vector.load %arg12[%c2_39, %c1_40, %c0_41] : memref<10x18x4xf32, #tpu.memory_space<vmem>>, vector<8x16x4xf32>
    %c2_42 = arith.constant 2 : index
    %c2_43 = arith.constant 2 : index
    %c0_44 = arith.constant 0 : index
    %35 = vector.load %arg12[%c2_42, %c2_43, %c0_44] : memref<10x18x4xf32, #tpu.memory_space<vmem>>, vector<8x16x4xf32>
    %36 = tpu.concatenate %27, %28, %29, %30, %31, %32, %33, %34, %35 in 2 : vector<8x16x4xf32>, vector<8x16x4xf32>, vector<8x16x4xf32>, vector<8x16x4xf32>, vector<8x16x4xf32>, vector<8x16x4xf32>, vector<8x16x4xf32>, vector<8x16x4xf32>, vector<8x16x4xf32> -> vector<8x16x36xf32>
    %37 = vector.shape_cast %36 : vector<8x16x36xf32> to vector<128x36xf32>
    %c0_45 = arith.constant 0 : index
    %c0_46 = arith.constant 0 : index
    %38 = vector.load %arg7[%c0_45, %c0_46] : memref<36x4xf32, #tpu.memory_space<vmem>>, vector<36x4xf32>
    %cst_47 = arith.constant dense<0.000000e+00> : vector<128x4xf32>
    %39 = tpu.matmul %37, %38, %cst_47 {dimension_numbers = #tpu.dot_dimension_numbers<[1], [0], [0], [1], [0, 0, 1, 1], [], []>} : vector<128x36xf32>, vector<36x4xf32>, vector<128x4xf32> -> vector<128x4xf32>
    %c0_48 = arith.constant 0 : index
    %c0_49 = arith.constant 0 : index
    %40 = vector.load %arg8[%c0_48, %c0_49] : memref<1x4xf32, #tpu.memory_space<vmem>>, vector<1x4xf32>
    %41 = vector.broadcast %40 : vector<1x4xf32> to vector<128x4xf32>
    %42 = arith.addf %39, %41 : vector<128x4xf32>
    %cst_50 = arith.constant 0.000000e+00 : f32
    %43 = vector.broadcast %cst_50 : f32 to vector<128x4xf32>
    %44 = arith.maximumf %42, %43 : vector<128x4xf32>
    %c0_51 = arith.constant 0 : index
    %c0_52 = arith.constant 0 : index
    %45 = vector.load %arg9[%c0_51, %c0_52] : memref<4x16xf32, #tpu.memory_space<vmem>>, vector<4x16xf32>
    %cst_53 = arith.constant dense<0.000000e+00> : vector<128x16xf32>
    %46 = tpu.matmul %44, %45, %cst_53 {dimension_numbers = #tpu.dot_dimension_numbers<[1], [0], [0], [1], [0, 0, 1, 1], [], []>} : vector<128x4xf32>, vector<4x16xf32>, vector<128x16xf32> -> vector<128x16xf32>
    %c0_54 = arith.constant 0 : index
    %c0_55 = arith.constant 0 : index
    %c0_56 = arith.constant 0 : index
    %c0_57 = arith.constant 0 : index
    %47 = vector.load %arg2[%c0_54, %c0_55, %c0_56, %c0_57] : memref<1x8x16x16xf32, #tpu.memory_space<vmem>>, vector<1x8x16x16xf32>
    %48 = vector.shape_cast %47 : vector<1x8x16x16xf32> to vector<128x16xf32>
    %c0_58 = arith.constant 0 : index
    %c0_59 = arith.constant 0 : index
    %49 = vector.load %arg10[%c0_58, %c0_59] : memref<1x16xf32, #tpu.memory_space<vmem>>, vector<1x16xf32>
    %50 = vector.broadcast %49 : vector<1x16xf32> to vector<128x16xf32>
    %51 = arith.addf %46, %50 : vector<128x16xf32>
    %52 = arith.addf %51, %48 : vector<128x16xf32>
    %cst_60 = arith.constant 0.000000e+00 : f32
    %53 = vector.broadcast %cst_60 : f32 to vector<128x16xf32>
    %54 = arith.maximumf %52, %53 : vector<128x16xf32>
    %55 = vector.shape_cast %54 : vector<128x16xf32> to vector<1x8x16x16xf32>
    %c0_61 = arith.constant 0 : index
    %c0_62 = arith.constant 0 : index
    %c0_63 = arith.constant 0 : index
    %c0_64 = arith.constant 0 : index
    %56 = vector.load %arg11[%c0_61, %c0_62, %c0_63, %c0_64] : memref<1x8x16x16xf32, #tpu.memory_space<vmem>>, vector<1x8x16x16xf32>
    tpu.vector_store %arg11[%c0_61, %c0_62, %c0_63, %c0_64], %55 {strides = array<i32>} : memref<1x8x16x16xf32, #tpu.memory_space<vmem>>, vector<1x8x16x16xf32>,
    return
  }
  func.func @transform_0(%arg0: i32, %arg1: i32) -> (i32, i32, i32, i32) {
    %c0_i32 = arith.constant 0 : i32
    %c0_i32_0 = arith.constant 0 : i32
    %c0_i32_1 = arith.constant 0 : i32
    return %arg0, %arg1, %c0_i32, %c0_i32_0 : i32, i32, i32, i32
  }
  func.func @transform_1(%arg0: i32, %arg1: i32) -> (i32, i32, i32, i32) {
    %c8_i32 = arith.constant 8 : i32
    %0 = arith.muli %arg1, %c8_i32 : i32
    %c1_i32 = arith.constant 1 : i32
    %1 = arith.subi %0, %c1_i32 : i32
    %c0_i32 = arith.constant 0 : i32
    %2 = arith.maxsi %1, %c0_i32 : i32
    %c0_i32_0 = arith.constant 0 : i32
    %c0_i32_1 = arith.constant 0 : i32
    %c0_i32_2 = arith.constant 0 : i32
    return %arg0, %2, %c0_i32_0, %c0_i32_1 : i32, i32, i32, i32
  }
  func.func @transform_2(%arg0: i32, %arg1: i32) -> (i32, i32, i32, i32) {
    %c1_i32 = arith.constant 1 : i32
    %0 = arith.addi %arg1, %c1_i32 : i32
    %c8_i32 = arith.constant 8 : i32
    %1 = arith.muli %0, %c8_i32 : i32
    %c15_i32 = arith.constant 15 : i32
    %2 = arith.minsi %1, %c15_i32 : i32
    %c0_i32 = arith.constant 0 : i32
    %c0_i32_0 = arith.constant 0 : i32
    %c0_i32_1 = arith.constant 0 : i32
    return %arg0, %2, %c0_i32, %c0_i32_0 : i32, i32, i32, i32
  }
  func.func @transform_3(%arg0: i32, %arg1: i32) -> (i32, i32) {
    %c0_i32 = arith.constant 0 : i32
    %c0_i32_0 = arith.constant 0 : i32
    %c0_i32_1 = arith.constant 0 : i32
    return %c0_i32, %c0_i32_0 : i32, i32
  }
  func.func @transform_4(%arg0: i32, %arg1: i32) -> (i32, i32) {
    %c0_i32 = arith.constant 0 : i32
    %c0_i32_0 = arith.constant 0 : i32
    %c0_i32_1 = arith.constant 0 : i32
    return %c0_i32, %c0_i32_0 : i32, i32
  }
  func.func @transform_5(%arg0: i32, %arg1: i32) -> (i32, i32) {
    %c0_i32 = arith.constant 0 : i32
    %c0_i32_0 = arith.constant 0 : i32
    %c0_i32_1 = arith.constant 0 : i32
    return %c0_i32, %c0_i32_0 : i32, i32
  }
  func.func @transform_6(%arg0: i32, %arg1: i32) -> (i32, i32) {
    %c0_i32 = arith.constant 0 : i32
    %c0_i32_0 = arith.constant 0 : i32
    %c0_i32_1 = arith.constant 0 : i32
    return %c0_i32, %c0_i32_0 : i32, i32
  }
  func.func @transform_7(%arg0: i32, %arg1: i32) -> (i32, i32) {
    %c0_i32 = arith.constant 0 : i32
    %c0_i32_0 = arith.constant 0 : i32
    %c0_i32_1 = arith.constant 0 : i32
    return %c0_i32, %c0_i32_0 : i32, i32
  }
  func.func @transform_8(%arg0: i32, %arg1: i32) -> (i32, i32) {
    %c0_i32 = arith.constant 0 : i32
    %c0_i32_0 = arith.constant 0 : i32
    %c0_i32_1 = arith.constant 0 : i32
    return %c0_i32, %c0_i32_0 : i32, i32
  }
  func.func @transform_9(%arg0: i32, %arg1: i32) -> (i32, i32, i32, i32) {
    %c0_i32 = arith.constant 0 : i32
    %c0_i32_0 = arith.constant 0 : i32
    %c0_i32_1 = arith.constant 0 : i32
    return %arg0, %arg1, %c0_i32, %c0_i32_0 : i32, i32, i32, i32
  }
}

</mosaic_0001>

<llo_original>
// kernel: tpu_custom_call.1
$region0: #{tpu_custom_call.1}
  #allocation0 [shape = 'u32[]', space=smem, size = 0x4, offset = 0x4, fixed_abs, tag = 'smem constant byte address 0x4 - core index']
  #allocation1 [shape = 'u32[144,128]{1,0:T(1,128)}', space=vmem, size = 0x12000, scoped, tag = 'internal scratch']
  #allocation2 [shape = 'f32[10,18,4]{2,1,0:T(8,128)}', space=vmem, size = 0x1e000, scoped, tag = 'scratch operand']
  %s0 = inlined_call_operand.hbm [shape: f32[2,16,16,16], index: 0, kind: input, shape index: {}]
  %s1 = inlined_call_operand.hbm [shape: f32[2,16,16,16], index: 1, kind: input, shape index: {}]
  %s2 = inlined_call_operand.hbm [shape: f32[2,16,16,16], index: 2, kind: input, shape index: {}]
  %s3 = inlined_call_operand.hbm [shape: f32[16,4], index: 3, kind: input, shape index: {}]
  %s4 = inlined_call_operand.hbm [shape: f32[1,4], index: 4, kind: input, shape index: {}]
  %s5 = inlined_call_operand.hbm [shape: f32[36,4], index: 5, kind: input, shape index: {}]
  %s6 = inlined_call_operand.hbm [shape: f32[1,4], index: 6, kind: input, shape index: {}]
  %s7 = inlined_call_operand.hbm [shape: f32[4,16], index: 7, kind: input, shape index: {}]
  %s8 = inlined_call_operand.hbm [shape: f32[1,16], index: 8, kind: input, shape index: {}]
  %s9 = inlined_call_operand.hbm [shape: f32[2,16,16,16], index: 9, kind: output, shape index: {}]
  %s10 = sld [smem:[#allocation0]]
  $region121: #{tpu_custom_call.1} parent=0
    _
  %s12 = ssub.s32 1, %s10
  %s13 = scalar_select 0, %s12, %s10
  $region1: #{tpu_custom_call.1} parent=0
    #allocation3 [shape = 'u8[131072]{0}', space=vmem, size = 0x20000, scoped, tag = 'input window, operand 0']
    #allocation4 [shape = 's32[2]{0}', space=sflag, size = 0x8, scoped, tag = 'scoped memory for tpu_custom_call.1']
    #allocation5 [shape = 's32[2]{0}', space=sflag, size = 0x8, scoped, tag = 'scoped memory for tpu_custom_call.1']
    #allocation6 [shape = 'u8[16384]{0}', space=vmem, size = 0x4000, scoped, tag = 'input window, operand 1']
    #allocation7 [shape = 's32[2]{0}', space=sflag, size = 0x8, scoped, tag = 'scoped memory for tpu_custom_call.1']
    #allocation8 [shape = 'u8[16384]{0}', space=vmem, size = 0x4000, scoped, tag = 'input window, operand 2']
    #allocation9 [shape = 'u8[8192]{0}', space=vmem, size = 0x2000, scoped, tag = 'input window, operand 3, single buffered']
    #allocation10 [shape = 's32[1]{0}', space=sflag, size = 0x4, scoped, tag = 'scoped memory for tpu_custom_call.1']
    #allocation11 [shape = 'u8[512]{0}', space=vmem, size = 0x400, scoped, tag = 'input window, operand 4, single buffered']
    #allocation12 [shape = 'u8[20480]{0}', space=vmem, size = 0x5000, scoped, tag = 'input window, operand 5, single buffered']
    #allocation13 [shape = 's32[1]{0}', space=sflag, size = 0x4, scoped, tag = 'scoped memory for tpu_custom_call.1']
    #allocation14 [shape = 'u8[512]{0}', space=vmem, size = 0x400, scoped, tag = 'input window, operand 6, single buffered']
    #allocation15 [shape = 'u8[2048]{0}', space=vmem, size = 0x800, scoped, tag = 'input window, operand 7, single buffered']
    #allocation16 [shape = 's32[1]{0}', space=sflag, size = 0x4, scoped, tag = 'scoped memory for tpu_custom_call.1']
    #allocation17 [shape = 'u8[512]{0}', space=vmem, size = 0x400, scoped, tag = 'input window, operand 8, single buffered']
    #allocation18 [shape = 'u8[131072]{0}', space=vmem, size = 0x20000, scoped, tag = 'output window, operand 0']
    %14 = vsyncpa [#allocation4], 0
    %s15 = scalar_lea.sflag [#allocation4], 1
    %16 = vsyncpa %s15, 0
    %17 = vsyncpa [#allocation7], 0
    %s18 = scalar_lea.sflag [#allocation7], 1
    %19 = vsyncpa %s18, 0
    %20 = vsyncpa [#allocation10], 0
    %21 = vsyncpa [#allocation13], 0
    %22 = vsyncpa [#allocation16], 0
    %23 = vsyncpa [#allocation5], 0
    %s24 = scalar_lea.sflag [#allocation5], 1
    %25 = vsyncpa %s24, 0
    loop: start=0, step=1, limit=6
    $region2: #{tpu_custom_call.1} parent=1 // loop_pre_header
      _
    $region3: #{tpu_custom_call.1} parent=1 // loop_header
      %s27 = sphi 0, %s31
      %p28 = scmp.ge.s32.totalorder %s27, 6
      %s34 = sphi 0, %s46
      %s35 = sphi 0, %s42
      %s36 = sphi 0, %s34
      %s37 = sphi 0, %s35
      %s38 = sphi 0, %s36
      %s39 = sphi 0, %s37
      %s51 = sphi 0, %s53
      %s54 = sphi 0, %s51
      %s55 = sphi 0, %s54
      %s71 = sphi 0, %s55
      %s87 = sphi 0, %s89
      %s90 = sphi 0, %s87
      %s91 = sphi 0, %s90
      %s107 = sphi 0, %s91
      %s123 = sphi 0, %s125
      %s126 = sphi 0, %s123
      %s127 = sphi 0, %s126
      %s143 = sphi 0, %s127
      %s147 = sphi 0, %s147
      %s149 = sphi 0, %s147
      %s150 = sphi 0, %s149
      %s164 = sphi 0, %s150
      %s168 = sphi 0, %s168
      %s170 = sphi 0, %s168
      %s171 = sphi 0, %s170
      %s185 = sphi 0, %s171
      %s189 = sphi 0, %s189
      %s191 = sphi 0, %s189
      %s192 = sphi 0, %s191
      %s206 = sphi 0, %s192
      %s210 = sphi 0, %s210
      %s212 = sphi 0, %s210
      %s213 = sphi 0, %s212
      %s227 = sphi 0, %s213
      %s231 = sphi 0, %s231
      %s233 = sphi 0, %s231
      %s234 = sphi 0, %s233
      %s248 = sphi 0, %s234
      %s252 = sphi 0, %s252
      %s254 = sphi 0, %s252
      %s255 = sphi 0, %s254
      %s269 = sphi 0, %s255
      %s277 = sphi 0, %s279
      %s280 = sphi 0, %s277
      %s281 = sphi 0, %s280
      %s297 = sphi 0, %s281
    $region4: #{tpu_custom_call.1} parent=1 // loop_header_branch
      %30 = sbr.rel (%p28) target = $region8
    $region5: #{tpu_custom_call.1} parent=1 // loop_body
      %s32 = ssub.s32 %s27, 1
      %s33 = ssub.s32 %s27, 2
      %s40 = sadd.s32 1, %s35
      %p41 = scmp.ge.s32.totalorder %s40, 2
      %s42 = scalar_select %p41, 0, %s40
      %s43 = sadd.s32 1, %s34
      %s44 = scalar_select %p41, %s43, %s34
      %p45 = scmp.ge.s32.totalorder %s44, 2
      %s46 = scalar_select %p45, 0, %s44
      %s47 = ssub.s32 %s34, %s46
      %s48 = ssub.s32 %s35, %s42
      %s49 = sor.u32 %s47, %s48
      %p50 = scmp.eq.s32.totalorder %s49, 0
      %s52 = sadd.s32 %s51, 1
      %s53 = scalar_select %p50, %s51, %s52
      %p56 = pneg %p50
      %p57 = scmp.eq.s32.totalorder %s27, 3
      %p58 = por %p56, %p57
      %p59 = scmp.ne.s32.totalorder %s51, %s54
      %p60 = scmp.eq.s32.totalorder %s27, 0
      %p61 = por %p59, %p60
      %p62 = scmp.ne.s32.totalorder %s51, %s54
      %p63 = scmp.eq.s32.totalorder %s32, 3
      %p64 = por %p62, %p63
      %p65 = scmp.ne.s32.totalorder %s54, %s55
      %p66 = scmp.eq.s32.totalorder %s32, 0
      %p67 = por %p65, %p66
      %p68 = scmp.ne.s32.totalorder %s54, %s55
      %p69 = scmp.eq.s32.totalorder %s33, 3
      %p70 = por %p68, %p69
      %p72 = scmp.ne.s32.totalorder %s55, %s71
      %p73 = scmp.eq.s32.totalorder %s33, 0
      %p74 = por %p72, %p73
      %s75 = smul.u32 %s35, 8
      %s76 = ssub.s32 %s75, 1
      %p77 = scmp.gt.s32.totalorder %s76, 0
      %s78 = scalar_select %p77, %s76, 0
      %s79 = smul.u32 %s42, 8
      %s80 = ssub.s32 %s79, 1
      %p81 = scmp.gt.s32.totalorder %s80, 0
      %s82 = scalar_select %p81, %s80, 0
      %s83 = ssub.s32 %s34, %s46
      %s84 = ssub.s32 %s78, %s82
      %s85 = sor.u32 %s83, %s84
      %p86 = scmp.eq.s32.totalorder %s85, 0
      %s88 = sadd.s32 %s87, 1
      %s89 = scalar_select %p86, %s87, %s88
      %p92 = pneg %p86
      %p93 = scmp.eq.s32.totalorder %s27, 3
      %p94 = por %p92, %p93
      %p95 = scmp.ne.s32.totalorder %s87, %s90
      %p96 = scmp.eq.s32.totalorder %s27, 0
      %p97 = por %p95, %p96
      %p98 = scmp.ne.s32.totalorder %s87, %s90
      %p99 = scmp.eq.s32.totalorder %s32, 3
      %p100 = por %p98, %p99
      %p101 = scmp.ne.s32.totalorder %s90, %s91
      %p102 = scmp.eq.s32.totalorder %s32, 0
      %p103 = por %p101, %p102
      %p104 = scmp.ne.s32.totalorder %s90, %s91
      %p105 = scmp.eq.s32.totalorder %s33, 3
      %p106 = por %p104, %p105
      %p108 = scmp.ne.s32.totalorder %s91, %s107
      %p109 = scmp.eq.s32.totalorder %s33, 0
      %p110 = por %p108, %p109
      %s111 = sadd.s32 %s35, 1
      %s112 = smul.u32 %s111, 8
      %p113 = scmp.lt.s32.totalorder %s112, 15
      %s114 = scalar_select %p113, %s112, 15
      %s115 = sadd.s32 %s42, 1
      %s116 = smul.u32 %s115, 8
      %p117 = scmp.lt.s32.totalorder %s116, 15
      %s118 = scalar_select %p117, %s116, 15
      %s119 = ssub.s32 %s34, %s46
      %s120 = ssub.s32 %s114, %s118
      %s121 = sor.u32 %s119, %s120
      %p122 = scmp.eq.s32.totalorder %s121, 0
      %s124 = sadd.s32 %s123, 1
      %s125 = scalar_select %p122, %s123, %s124
      %p128 = pneg %p122
      %p129 = scmp.eq.s32.totalorder %s27, 3
      %p130 = por %p128, %p129
      %p131 = scmp.ne.s32.totalorder %s123, %s126
      %p132 = scmp.eq.s32.totalorder %s27, 0
      %p133 = por %p131, %p132
      %p134 = scmp.ne.s32.totalorder %s123, %s126
      %p135 = scmp.eq.s32.totalorder %s32, 3
      %p136 = por %p134, %p135
      %p137 = scmp.ne.s32.totalorder %s126, %s127
      %p138 = scmp.eq.s32.totalorder %s32, 0
      %p139 = por %p137, %p138
      %p140 = scmp.ne.s32.totalorder %s126, %s127
      %p141 = scmp.eq.s32.totalorder %s33, 3
      %p142 = por %p140, %p141
      %p144 = scmp.ne.s32.totalorder %s127, %s143
      %p145 = scmp.eq.s32.totalorder %s33, 0
      %p146 = por %p144, %p145
      %s148 = sadd.s32 %s147, 1
      %p151 = scmp.eq.s32.totalorder %s27, 3
      %p152 = scmp.ne.s32.totalorder %s147, %s149
      %p153 = scmp.eq.s32.totalorder %s27, 0
      %p154 = por %p152, %p153
      %p155 = scmp.ne.s32.totalorder %s147, %s149
      %p156 = scmp.eq.s32.totalorder %s32, 3
      %p157 = por %p155, %p156
      %p158 = scmp.ne.s32.totalorder %s149, %s150
      %p159 = scmp.eq.s32.totalorder %s32, 0
      %p160 = por %p158, %p159
      %p161 = scmp.ne.s32.totalorder %s149, %s150
      %p162 = scmp.eq.s32.totalorder %s33, 3
      %p163 = por %p161, %p162
      %p165 = scmp.ne.s32.totalorder %s150, %s164
      %p166 = scmp.eq.s32.totalorder %s33, 0
      %p167 = por %p165, %p166
      %s169 = sadd.s32 %s168, 1
      %p172 = scmp.eq.s32.totalorder %s27, 3
      %p173 = scmp.ne.s32.totalorder %s168, %s170
      %p174 = scmp.eq.s32.totalorder %s27, 0
      %p175 = por %p173, %p174
      %p176 = scmp.ne.s32.totalorder %s168, %s170
      %p177 = scmp.eq.s32.totalorder %s32, 3
      %p178 = por %p176, %p177
      %p179 = scmp.ne.s32.totalorder %s170, %s171
      %p180 = scmp.eq.s32.totalorder %s32, 0
      %p181 = por %p179, %p180
      %p182 = scmp.ne.s32.totalorder %s170, %s171
      %p183 = scmp.eq.s32.totalorder %s33, 3
      %p184 = por %p182, %p183
      %p186 = scmp.ne.s32.totalorder %s171, %s185
      %p187 = scmp.eq.s32.totalorder %s33, 0
      %p188 = por %p186, %p187
      %s190 = sadd.s32 %s189, 1
      %p193 = scmp.eq.s32.totalorder %s27, 3
      %p194 = scmp.ne.s32.totalorder %s189, %s191
      %p195 = scmp.eq.s32.totalorder %s27, 0
      %p196 = por %p194, %p195
      %p197 = scmp.ne.s32.totalorder %s189, %s191
      %p198 = scmp.eq.s32.totalorder %s32, 3
      %p199 = por %p197, %p198
      %p200 = scmp.ne.s32.totalorder %s191, %s192
      %p201 = scmp.eq.s32.totalorder %s32, 0
      %p202 = por %p200, %p201
      %p203 = scmp.ne.s32.totalorder %s191, %s192
      %p204 = scmp.eq.s32.totalorder %s33, 3
      %p205 = por %p203, %p204
      %p207 = scmp.ne.s32.totalorder %s192, %s206
      %p208 = scmp.eq.s32.totalorder %s33, 0
      %p209 = por %p207, %p208
      %s211 = sadd.s32 %s210, 1
      %p214 = scmp.eq.s32.totalorder %s27, 3
      %p215 = scmp.ne.s32.totalorder %s210, %s212
      %p216 = scmp.eq.s32.totalorder %s27, 0
      %p217 = por %p215, %p216
      %p218 = scmp.ne.s32.totalorder %s210, %s212
      %p219 = scmp.eq.s32.totalorder %s32, 3
      %p220 = por %p218, %p219
      %p221 = scmp.ne.s32.totalorder %s212, %s213
      %p222 = scmp.eq.s32.totalorder %s32, 0
      %p223 = por %p221, %p222
      %p224 = scmp.ne.s32.totalorder %s212, %s213
      %p225 = scmp.eq.s32.totalorder %s33, 3
      %p226 = por %p224, %p225
      %p228 = scmp.ne.s32.totalorder %s213, %s227
      %p229 = scmp.eq.s32.totalorder %s33, 0
      %p230 = por %p228, %p229
      %s232 = sadd.s32 %s231, 1
      %p235 = scmp.eq.s32.totalorder %s27, 3
      %p236 = scmp.ne.s32.totalorder %s231, %s233
      %p237 = scmp.eq.s32.totalorder %s27, 0
      %p238 = por %p236, %p237
      %p239 = scmp.ne.s32.totalorder %s231, %s233
      %p240 = scmp.eq.s32.totalorder %s32, 3
      %p241 = por %p239, %p240
      %p242 = scmp.ne.s32.totalorder %s233, %s234
      %p243 = scmp.eq.s32.totalorder %s32, 0
      %p244 = por %p242, %p243
      %p245 = scmp.ne.s32.totalorder %s233, %s234
      %p246 = scmp.eq.s32.totalorder %s33, 3
      %p247 = por %p245, %p246
      %p249 = scmp.ne.s32.totalorder %s234, %s248
      %p250 = scmp.eq.s32.totalorder %s33, 0
      %p251 = por %p249, %p250
      %s253 = sadd.s32 %s252, 1
      %p256 = scmp.eq.s32.totalorder %s27, 3
      %p257 = scmp.ne.s32.totalorder %s252, %s254
      %p258 = scmp.eq.s32.totalorder %s27, 0
      %p259 = por %p257, %p258
      %p260 = scmp.ne.s32.totalorder %s252, %s254
      %p261 = scmp.eq.s32.totalorder %s32, 3
      %p262 = por %p260, %p261
      %p263 = scmp.ne.s32.totalorder %s254, %s255
      %p264 = scmp.eq.s32.totalorder %s32, 0
      %p265 = por %p263, %p264
      %p266 = scmp.ne.s32.totalorder %s254, %s255
      %p267 = scmp.eq.s32.totalorder %s33, 3
      %p268 = por %p266, %p267
      %p270 = scmp.ne.s32.totalorder %s255, %s269
      %p271 = scmp.eq.s32.totalorder %s33, 0
      %p272 = por %p270, %p271
      %s273 = ssub.s32 %s34, %s46
      %s274 = ssub.s32 %s35, %s42
      %s275 = sor.u32 %s273, %s274
      %p276 = scmp.eq.s32.totalorder %s275, 0
      %s278 = sadd.s32 %s277, 1
      %s279 = scalar_select %p276, %s277, %s278
      %p282 = pneg %p276
      %p283 = scmp.eq.s32.totalorder %s27, 3
      %p284 = por %p282, %p283
      %p285 = scmp.ne.s32.totalorder %s277, %s280
      %p286 = scmp.eq.s32.totalorder %s27, 0
      %p287 = por %p285, %p286
      %p288 = scmp.ne.s32.totalorder %s277, %s280
      %p289 = scmp.eq.s32.totalorder %s32, 3
      %p290 = por %p288, %p289
      %p291 = scmp.ne.s32.totalorder %s280, %s281
      %p292 = scmp.eq.s32.totalorder %s32, 0
      %p293 = por %p291, %p292
      %p294 = scmp.ne.s32.totalorder %s280, %s281
      %p295 = scmp.eq.s32.totalorder %s33, 3
      %p296 = por %p294, %p295
      %p298 = scmp.ne.s32.totalorder %s281, %s297
      %p299 = scmp.eq.s32.totalorder %s33, 0
      %p300 = por %p298, %p299
      %p301 = scmp.le.s32.totalorder 1, %s27
      %p302 = scmp.lt.s32.totalorder %s27, 5
      %p303 = pnand %p301, %p302
      %p304 = pneg %p303
      // Predicated region
      $region9: #{tpu_custom_call.1} parent=5 // pred_check
        _
      $region10: #{tpu_custom_call.1} parent=5 // pred_check_branch
        %306 = sbr.rel (%p303) target = $region12
      $region11: #{tpu_custom_call.1} parent=5 // pred_region
        %s307 = ssub.s32 %s27, 1
        // Predicated region
        $region13: #{tpu_custom_call.1} parent=11 // pred_check
          %p308 = pneg %p160
        $region14: #{tpu_custom_call.1} parent=11 // pred_check_branch
          %310 = sbr.rel (%p308) target = $region16
        $region15: #{tpu_custom_call.1} parent=11 // pred_region
          %s312 = ssub.s32 256, 256
          %313 = vsyncadd [#allocation10], %s312
          %s314 = sshll.u32 [#allocation9], 4
          %s315 = int_to_ptr.vmem [resolvable:$true] %s314
          %320 = dma.hbm_to_vmem [thread:$0]  %s3, 256, %s315, [#allocation10], 128, 128, 8
        $region16: #{tpu_custom_call.1} parent=11 // pred_fallthru
          _
        // Predicated region
        $region17: #{tpu_custom_call.1} parent=11 // pred_check
          %p321 = pneg %p181
        $region18: #{tpu_custom_call.1} parent=11 // pred_check_branch
          %323 = sbr.rel (%p321) target = $region20
        $region19: #{tpu_custom_call.1} parent=11 // pred_region
          %s325 = ssub.s32 16, 16
          %326 = vsyncadd [#allocation10], %s325
          %s328 = sshll.u32 [#allocation11], 4
          %s329 = int_to_ptr.vmem [resolvable:$true] %s328
          %331 = dma.hbm_to_vmem [thread:$0]  %s4, 16, %s329, [#allocation10]
        $region20: #{tpu_custom_call.1} parent=11 // pred_fallthru
          _
        // Predicated region
        $region21: #{tpu_custom_call.1} parent=11 // pred_check
          %p332 = pneg %p202
        $region22: #{tpu_custom_call.1} parent=11 // pred_check_branch
          %334 = sbr.rel (%p332) target = $region24
        $region23: #{tpu_custom_call.1} parent=11 // pred_region
          %s336 = ssub.s32 640, 640
          %337 = vsyncadd [#allocation13], %s336
          %s338 = sshll.u32 [#allocation12], 4
          %s339 = int_to_ptr.vmem [resolvable:$true] %s338
          %344 = dma.hbm_to_vmem [thread:$0]  %s5, 640, %s339, [#allocation13], 128, 128, 8
        $region24: #{tpu_custom_call.1} parent=11 // pred_fallthru
          _
        // Predicated region
        $region25: #{tpu_custom_call.1} parent=11 // pred_check
          %p345 = pneg %p223
        $region26: #{tpu_custom_call.1} parent=11 // pred_check_branch
          %347 = sbr.rel (%p345) target = $region28
        $region27: #{tpu_custom_call.1} parent=11 // pred_region
          %s349 = ssub.s32 16, 16
          %350 = vsyncadd [#allocation13], %s349
          %s352 = sshll.u32 [#allocation14], 4
          %s353 = int_to_ptr.vmem [resolvable:$true] %s352
          %355 = dma.hbm_to_vmem [thread:$0]  %s6, 16, %s353, [#allocation13]
        $region28: #{tpu_custom_call.1} parent=11 // pred_fallthru
          _
        // Predicated region
        $region29: #{tpu_custom_call.1} parent=11 // pred_check
          %p356 = pneg %p244
        $region30: #{tpu_custom_call.1} parent=11 // pred_check_branch
          %358 = sbr.rel (%p356) target = $region32
        $region31: #{tpu_custom_call.1} parent=11 // pred_region
          %s360 = ssub.s32 64, 64
          %361 = vsyncadd [#allocation16], %s360
          %s363 = sshll.u32 [#allocation15], 4
          %s364 = int_to_ptr.vmem [resolvable:$true] %s363
          %366 = dma.hbm_to_vmem [thread:$0]  %s7, 64, %s364, [#allocation16]
        $region32: #{tpu_custom_call.1} parent=11 // pred_fallthru
          _
        // Predicated region
        $region33: #{tpu_custom_call.1} parent=11 // pred_check
          %p367 = pneg %p265
        $region34: #{tpu_custom_call.1} parent=11 // pred_check_branch
          %369 = sbr.rel (%p367) target = $region36
        $region35: #{tpu_custom_call.1} parent=11 // pred_region
          %s371 = ssub.s32 16, 16
          %372 = vsyncadd [#allocation16], %s371
          %s374 = sshll.u32 [#allocation17], 4
          %s375 = int_to_ptr.vmem [resolvable:$true] %s374
          %377 = dma.hbm_to_vmem [thread:$0]  %s8, 16, %s375, [#allocation16]
        $region36: #{tpu_custom_call.1} parent=11 // pred_fallthru
          _
      $region12: #{tpu_custom_call.1} parent=5 // pred_fallthru
        _
      %p378 = scmp.lt.s32.totalorder %s27, 4
      // Predicated region
      $region37: #{tpu_custom_call.1} parent=5 // pred_check
        %p379 = pneg %p378
      $region38: #{tpu_custom_call.1} parent=5 // pred_check_branch
        %381 = sbr.rel (%p379) target = $region40
      $region39: #{tpu_custom_call.1} parent=5 // pred_region
        // Predicated region
        $region41: #{tpu_custom_call.1} parent=39 // pred_check
          %p382 = pneg %p61
        $region42: #{tpu_custom_call.1} parent=39 // pred_check_branch
          %384 = sbr.rel (%p382) target = $region44
        $region43: #{tpu_custom_call.1} parent=39 // pred_region
          %s385 = sand.u32 %s51, 1
          %s386 = scalar_lea.sflag [#allocation4], %s385
          %s387 = sand.u32 %s51, 1
          %s388 = smul.addr %s387, 128
          %s389 = scalar_lea.vmem [#allocation3], %s388
          %s390 = smul.u32 8, %s35
          %s392 = ssub.s32 2048, 2048
          %393 = vsyncadd %s386, %s392
          %s394 = smul.addr %s390, 2
          %s395 = smul.addr %s34, 32
          %s396 = sadd.s32 %s394, %s395
          %s397 = smul.addr %s396, 128
          %s398 = scalar_lea.hbm %s0, %s397
          %s399 = sshll.u32 %s389, 4
          %s400 = int_to_ptr.vmem [resolvable:$true] %s399
          %405 = dma.hbm_to_vmem [thread:$0]  %s398, 2048, %s400, %s386, 128, 128, 8
        $region44: #{tpu_custom_call.1} parent=39 // pred_fallthru
          _
        // Predicated region
        $region45: #{tpu_custom_call.1} parent=39 // pred_check
          %p406 = pneg %p97
        $region46: #{tpu_custom_call.1} parent=39 // pred_check_branch
          %408 = sbr.rel (%p406) target = $region48
        $region47: #{tpu_custom_call.1} parent=39 // pred_region
          %s409 = sand.u32 %s27, 1
          %s410 = scalar_lea.sflag [#allocation7], %s409
          %s411 = sand.u32 %s87, 1
          %s412 = smul.addr %s411, 16
          %s413 = scalar_lea.vmem [#allocation6], %s412
          %s414 = smul.u32 %s35, 8
          %s415 = ssub.s32 %s414, 1
          %p416 = scmp.gt.s32.totalorder %s415, 0
          %s417 = scalar_select %p416, %s415, 0
          %s419 = ssub.s32 256, 256
          %420 = vsyncadd %s410, %s419
          %s421 = smul.addr %s417, 2
          %s422 = smul.addr %s34, 32
          %s423 = sadd.s32 %s421, %s422
          %s424 = smul.addr %s423, 128
          %s425 = scalar_lea.hbm %s1, %s424
          %s426 = sshll.u32 %s413, 4
          %s427 = int_to_ptr.vmem [resolvable:$true] %s426
          %432 = dma.hbm_to_vmem [thread:$0]  %s425, 256, %s427, %s410, 128, 128, 8
        $region48: #{tpu_custom_call.1} parent=39 // pred_fallthru
          _
        // Predicated region
        $region49: #{tpu_custom_call.1} parent=39 // pred_check
          %p433 = pneg %p133
        $region50: #{tpu_custom_call.1} parent=39 // pred_check_branch
          %435 = sbr.rel (%p433) target = $region52
        $region51: #{tpu_custom_call.1} parent=39 // pred_region
          %s436 = sand.u32 %s27, 1
          %s437 = scalar_lea.sflag [#allocation7], %s436
          %s438 = sand.u32 %s123, 1
          %s439 = smul.addr %s438, 16
          %s440 = scalar_lea.vmem [#allocation8], %s439
          %s441 = sadd.s32 %s35, 1
          %s442 = smul.u32 %s441, 8
          %p443 = scmp.lt.s32.totalorder %s442, 15
          %s444 = scalar_select %p443, %s442, 15
          %s446 = ssub.s32 256, 256
          %447 = vsyncadd %s437, %s446
          %s448 = smul.addr %s444, 2
          %s449 = smul.addr %s34, 32
          %s450 = sadd.s32 %s448, %s449
          %s451 = smul.addr %s450, 128
          %s452 = scalar_lea.hbm %s2, %s451
          %s453 = sshll.u32 %s440, 4
          %s454 = int_to_ptr.vmem [resolvable:$true] %s453
          %459 = dma.hbm_to_vmem [thread:$0]  %s452, 256, %s454, %s437, 128, 128, 8
        $region52: #{tpu_custom_call.1} parent=39 // pred_fallthru
          _
      $region40: #{tpu_custom_call.1} parent=5 // pred_fallthru
        _
      %p460 = scmp.le.s32.totalorder 1, %s27
      %p461 = scmp.lt.s32.totalorder %s27, 5
      %p462 = pnand %p460, %p461
      %p463 = pneg %p462
      // Predicated region
      $region53: #{tpu_custom_call.1} parent=5 // pred_check
        _
      $region54: #{tpu_custom_call.1} parent=5 // pred_check_branch
        %465 = sbr.rel (%p462) target = $region56
      $region55: #{tpu_custom_call.1} parent=5 // pred_region
        %s466 = ssub.s32 %s27, 1
        %s467 = sand.u32 %s54, 1
        %s468 = scalar_lea.sflag [#allocation4], %s467
        %s469 = sand.u32 %s54, 1
        %s470 = smul.addr %s469, 128
        %s471 = scalar_lea.vmem [#allocation3], %s470
        // Predicated region
        $region57: #{tpu_custom_call.1} parent=55 // pred_check
          %p472 = pneg %p67
        $region58: #{tpu_custom_call.1} parent=55 // pred_check_branch
          %474 = sbr.rel (%p472) target = $region60
        $region59: #{tpu_custom_call.1} parent=55 // pred_region
          %475 = dma.done %s468, 2048
        $region60: #{tpu_custom_call.1} parent=55 // pred_fallthru
          _
        %s476 = sand.u32 %s32, 1
        %s477 = scalar_lea.sflag [#allocation7], %s476
        %s478 = sand.u32 %s90, 1
        %s479 = smul.addr %s478, 16
        %s480 = scalar_lea.vmem [#allocation6], %s479
        // Predicated region
        $region61: #{tpu_custom_call.1} parent=55 // pred_check
          %p481 = pneg %p103
        $region62: #{tpu_custom_call.1} parent=55 // pred_check_branch
          %483 = sbr.rel (%p481) target = $region64
        $region63: #{tpu_custom_call.1} parent=55 // pred_region
          %484 = dma.done %s477, 256
        $region64: #{tpu_custom_call.1} parent=55 // pred_fallthru
          _
        %s485 = sand.u32 %s32, 1
        %s486 = scalar_lea.sflag [#allocation7], %s485
        %s487 = sand.u32 %s126, 1
        %s488 = smul.addr %s487, 16
        %s489 = scalar_lea.vmem [#allocation8], %s488
        // Predicated region
        $region65: #{tpu_custom_call.1} parent=55 // pred_check
          %p490 = pneg %p139
        $region66: #{tpu_custom_call.1} parent=55 // pred_check_branch
          %492 = sbr.rel (%p490) target = $region68
        $region67: #{tpu_custom_call.1} parent=55 // pred_region
          %493 = dma.done %s486, 256
        $region68: #{tpu_custom_call.1} parent=55 // pred_fallthru
          _
        // Predicated region
        $region69: #{tpu_custom_call.1} parent=55 // pred_check
          %p494 = pneg %p160
        $region70: #{tpu_custom_call.1} parent=55 // pred_check_branch
          %496 = sbr.rel (%p494) target = $region72
        $region71: #{tpu_custom_call.1} parent=55 // pred_region
          %497 = dma.done [#allocation10], 256
        $region72: #{tpu_custom_call.1} parent=55 // pred_fallthru
          _
        // Predicated region
        $region73: #{tpu_custom_call.1} parent=55 // pred_check
          %p498 = pneg %p181
        $region74: #{tpu_custom_call.1} parent=55 // pred_check_branch
          %500 = sbr.rel (%p498) target = $region76
        $region75: #{tpu_custom_call.1} parent=55 // pred_region
          %501 = dma.done [#allocation10], 16
        $region76: #{tpu_custom_call.1} parent=55 // pred_fallthru
          _
        // Predicated region
        $region77: #{tpu_custom_call.1} parent=55 // pred_check
          %p502 = pneg %p202
        $region78: #{tpu_custom_call.1} parent=55 // pred_check_branch
          %504 = sbr.rel (%p502) target = $region80
        $region79: #{tpu_custom_call.1} parent=55 // pred_region
          %505 = dma.done [#allocation13], 640
        $region80: #{tpu_custom_call.1} parent=55 // pred_fallthru
          _
        // Predicated region
        $region81: #{tpu_custom_call.1} parent=55 // pred_check
          %p506 = pneg %p223
        $region82: #{tpu_custom_call.1} parent=55 // pred_check_branch
          %508 = sbr.rel (%p506) target = $region84
        $region83: #{tpu_custom_call.1} parent=55 // pred_region
          %509 = dma.done [#allocation13], 16
        $region84: #{tpu_custom_call.1} parent=55 // pred_fallthru
          _
        // Predicated region
        $region85: #{tpu_custom_call.1} parent=55 // pred_check
          %p510 = pneg %p244
        $region86: #{tpu_custom_call.1} parent=55 // pred_check_branch
          %512 = sbr.rel (%p510) target = $region88
        $region87: #{tpu_custom_call.1} parent=55 // pred_region
          %513 = dma.done [#allocation16], 64
        $region88: #{tpu_custom_call.1} parent=55 // pred_fallthru
          _
        // Predicated region
        $region89: #{tpu_custom_call.1} parent=55 // pred_check
          %p514 = pneg %p265
        $region90: #{tpu_custom_call.1} parent=55 // pred_check_branch
          %516 = sbr.rel (%p514) target = $region92
        $region91: #{tpu_custom_call.1} parent=55 // pred_region
          %517 = dma.done [#allocation16], 16
        $region92: #{tpu_custom_call.1} parent=55 // pred_fallthru
          _
        %s518 = sand.u32 %s54, 1
        %s519 = scalar_lea.sflag [#allocation4], %s518
        %s520 = sand.u32 %s54, 1
        %s521 = smul.addr %s520, 128
        %s522 = scalar_lea.vmem [#allocation3], %s521
        %p523 = pneg %p67
        %p524 = pneg %p64
        %s525 = sand.u32 %s32, 1
        %s526 = scalar_lea.sflag [#allocation7], %s525
        %s527 = sand.u32 %s90, 1
        %s528 = smul.addr %s527, 16
        %s529 = scalar_lea.vmem [#allocation6], %s528
        %p530 = pneg %p103
        %p531 = pneg %p100
        %s532 = sand.u32 %s32, 1
        %s533 = scalar_lea.sflag [#allocation7], %s532
        %s534 = sand.u32 %s126, 1
        %s535 = smul.addr %s534, 16
        %s536 = scalar_lea.vmem [#allocation8], %s535
        %p537 = pneg %p139
        %p538 = pneg %p136
        %p539 = pneg %p160
        %p540 = pneg %p157
        %p541 = pneg %p181
        %p542 = pneg %p178
        %p543 = pneg %p202
        %p544 = pneg %p199
        %p545 = pneg %p223
        %p546 = pneg %p220
        %p547 = pneg %p244
        %p548 = pneg %p241
        %p549 = pneg %p265
        %p550 = pneg %p262
        %p551 = pneg %p293
        %p552 = pneg %p290
        %s553 = sand.u32 %s280, 1
        %s554 = scalar_lea.sflag [#allocation5], %s553
        %s555 = sand.u32 %s280, 1
        %s556 = smul.addr %s555, 128
        %s557 = scalar_lea.vmem [#allocation18], %s556
        %s558 = smul.u32 8, %s37
        %s559 = smul.u32 %s37, 8
        %s560 = ssub.s32 %s559, 1
        %p561 = scmp.gt.s32.totalorder %s560, 0
        %s562 = scalar_select %p561, %s560, 0
        %s563 = sadd.s32 %s37, 1
        %s564 = smul.u32 %s563, 8
        %p565 = scmp.lt.s32.totalorder %s564, 15
        %s566 = scalar_select %p565, %s564, 15
        %s567 = smul.u32 8, %s37
        %v568 = vld [vmem:[#allocation9] sm:$0xff]
        %v569 = vld [vmem:[#allocation9 + $0x8] sm:$0xff]
        %v570 = vld [vmem:[#allocation11] sm:$0x1]
        %v571 = vld [vmem:[%s471] sm:$0xff]
        %v572 = vld [vmem:[%s471 + $0x8] sm:$0xff]
        %v573 = vld [vmem:[%s471 + $0x10] sm:$0xff]
        %v574 = vld [vmem:[%s471 + $0x18] sm:$0xff]
        %v575 = vld [vmem:[%s471 + $0x20] sm:$0xff]
        %v576 = vld [vmem:[%s471 + $0x28] sm:$0xff]
        %v577 = vld [vmem:[%s471 + $0x30] sm:$0xff]
        %v578 = vld [vmem:[%s471 + $0x38] sm:$0xff]
        %v579 = vld [vmem:[%s471 + $0x40] sm:$0xff]
        %v580 = vld [vmem:[%s471 + $0x48] sm:$0xff]
        %v581 = vld [vmem:[%s471 + $0x50] sm:$0xff]
        %v582 = vld [vmem:[%s471 + $0x58] sm:$0xff]
        %v583 = vld [vmem:[%s471 + $0x60] sm:$0xff]
        %v584 = vld [vmem:[%s471 + $0x68] sm:$0xff]
        %v585 = vld [vmem:[%s471 + $0x70] sm:$0xff]
        %v586 = vld [vmem:[%s471 + $0x78] sm:$0xff]
        %v588 = vlaneseq
        %v589 = vshrl.u32 %v588, 7
        %v590 = vsub.s32 0, %v589
        %v591 = vrot.slane %v570, %v590
        %vm593 = vcmask 130048
        %v595 = vsel %vm593, %v571, 0
        %v598 = vsel %vm593, %v572, 0
        %v601 = vsel %vm593, %v573, 0
        %v604 = vsel %vm593, %v574, 0
        %v607 = vsel %vm593, %v575, 0
        %v610 = vsel %vm593, %v576, 0
        %v613 = vsel %vm593, %v577, 0
        %v616 = vsel %vm593, %v578, 0
        %v619 = vsel %vm593, %v579, 0
        %v622 = vsel %vm593, %v580, 0
        %v625 = vsel %vm593, %v581, 0
        %v628 = vsel %vm593, %v582, 0
        %v631 = vsel %vm593, %v583, 0
        %v634 = vsel %vm593, %v584, 0
        %v637 = vsel %vm593, %v585, 0
        %v640 = vsel %vm593, %v586, 0
        %642 = vmatprep.subr.mxu0 0.0
        %643 = vmatpush1.msra.mxu0 %v568
        %644 = vmatprep.subr.mxu0 0.0
        %645 = vmatpush1.msra.mxu0 %v569
        %646 = vmatprep.subr.mxu0 0.0
        %647 = vmatpush1.msra.mxu0 0.0
        %648 = vmatprep.subr.mxu0 0.0
        %649 = vmatpush1.msra.mxu0 0.0
        %650 = vmatprep.subr.mxu0 0.0
        %651 = vmatpush1.msra.mxu0 0.0
        %652 = vmatprep.subr.mxu0 0.0
        %653 = vmatpush1.msra.mxu0 0.0
        %654 = vmatprep.subr.mxu0 0.0
        %655 = vmatpush1.msra.mxu0 0.0
        %656 = vmatprep.subr.mxu0 0.0
        %657 = vmatpush1.msra.mxu0 0.0
        %658 = vmatprep.subr.mxu0 0.0
        %659 = vmatpush1.msra.mxu0 0.0
        %660 = vmatprep.subr.mxu0 0.0
        %661 = vmatpush1.msra.mxu0 0.0
        %662 = vmatprep.subr.mxu0 0.0
        %663 = vmatpush1.msra.mxu0 0.0
        %664 = vmatprep.subr.mxu0 0.0
        %665 = vmatpush1.msra.mxu0 0.0
        %666 = vmatprep.subr.mxu0 0.0
        %667 = vmatpush1.msra.mxu0 0.0
        %668 = vmatprep.subr.mxu0 0.0
        %669 = vmatpush1.msra.mxu0 0.0
        %670 = vmatprep.subr.mxu0 0.0
        %671 = vmatpush1.msra.mxu0 0.0
        %672 = vmatprep.subr.mxu0 0.0
        %673 = vmatpush1.msra.mxu0 0.0
        %674 = vmatprep.subr.mxu0 0.0
        %675 = vmatpush1.msra.mxu0 0.0
        %676 = vmatprep.subr.mxu0 0.0
        %677 = vmatpush1.msra.mxu0 0.0
        %678 = vmatprep.subr.mxu0 0.0
        %679 = vmatpush1.msra.mxu0 0.0
        %680 = vmatprep.subr.mxu0 0.0
        %681 = vmatpush1.msra.mxu0 0.0
        %682 = vmatprep.subr.mxu0 0.0
        %683 = vmatpush1.msra.mxu0 0.0
        %684 = vmatprep.subr.mxu0 0.0
        %685 = vmatpush1.msra.mxu0 0.0
        %686 = vmatprep.subr.mxu0 0.0
        %687 = vmatpush1.msra.mxu0 0.0
        %688 = vmatprep.subr.mxu0 0.0
        %689 = vmatpush1.msra.mxu0 0.0
        %690 = vmatprep.subr.mxu0 0.0
        %691 = vmatpush1.msra.mxu0 0.0
        %692 = vmatprep.subr.mxu0 0.0
        %693 = vmatpush1.msra.mxu0 0.0
        %694 = vmatprep.subr.mxu0 0.0
        %695 = vmatpush1.msra.mxu0 0.0
        %696 = vmatprep.subr.mxu0 0.0
        %697 = vmatpush1.msra.mxu0 0.0
        %698 = vmatprep.subr.mxu0 0.0
        %699 = vmatpush1.msra.mxu0 0.0
        %700 = vmatprep.subr.mxu0 0.0
        %701 = vmatpush1.msra.mxu0 0.0
        %702 = vmatprep.subr.mxu0 0.0
        %703 = vmatpush1.msra.mxu0 0.0
        %704 = vmatprep.subr.mxu0 0.0
        %705 = vmatpush1.msra.mxu0 0.0
        %706 = vmatprep.mubr.f32.mxu0 0.0
        %707 = vmatmul.mubr.f32.gmra.mrb[0].mxu0 %v595
        %v708 = vpop.f32.mrb[0].mxu0
        %v709 = vadd.f32 %v591, %v708
        %v710 = vpop.f32.mrb[0].mxu0
        %711 = vmatprep.mubr.f32.mxu0 0.0
        %712 = vmatmul.mubr.f32.gmra.mrb[0].mxu0 %v598
        %v713 = vpop.f32.mrb[0].mxu0
        %v714 = vadd.f32 %v591, %v713
        %v715 = vpop.f32.mrb[0].mxu0
        %716 = vmatprep.mubr.f32.mxu0 0.0
        %717 = vmatmul.mubr.f32.gmra.mrb[0].mxu0 %v601
        %v718 = vpop.f32.mrb[0].mxu0
        %v719 = vadd.f32 %v591, %v718
        %v720 = vpop.f32.mrb[0].mxu0
        %721 = vmatprep.mubr.f32.mxu0 0.0
        %722 = vmatmul.mubr.f32.gmra.mrb[0].mxu0 %v604
        %v723 = vpop.f32.mrb[0].mxu0
        %v724 = vadd.f32 %v591, %v723
        %v725 = vpop.f32.mrb[0].mxu0
        %726 = vmatprep.mubr.f32.mxu0 0.0
        %727 = vmatmul.mubr.f32.gmra.mrb[0].mxu0 %v607
        %v728 = vpop.f32.mrb[0].mxu0
        %v729 = vadd.f32 %v591, %v728
        %v730 = vpop.f32.mrb[0].mxu0
        %731 = vmatprep.mubr.f32.mxu0 0.0
        %732 = vmatmul.mubr.f32.gmra.mrb[0].mxu0 %v610
        %v733 = vpop.f32.mrb[0].mxu0
        %v734 = vadd.f32 %v591, %v733
        %v735 = vpop.f32.mrb[0].mxu0
        %736 = vmatprep.mubr.f32.mxu0 0.0
        %737 = vmatmul.mubr.f32.gmra.mrb[0].mxu0 %v613
        %v738 = vpop.f32.mrb[0].mxu0
        %v739 = vadd.f32 %v591, %v738
        %v740 = vpop.f32.mrb[0].mxu0
        %741 = vmatprep.mubr.f32.mxu0 0.0
        %742 = vmatmul.mubr.f32.gmra.mrb[0].mxu0 %v616
        %v743 = vpop.f32.mrb[0].mxu0
        %v744 = vadd.f32 %v591, %v743
        %v745 = vpop.f32.mrb[0].mxu0
        %746 = vmatprep.mubr.f32.mxu0 0.0
        %747 = vmatmul.mubr.f32.gmra.mrb[0].mxu0 %v619
        %v748 = vpop.f32.mrb[0].mxu0
        %v749 = vadd.f32 %v591, %v748
        %v750 = vpop.f32.mrb[0].mxu0
        %751 = vmatprep.mubr.f32.mxu0 0.0
        %752 = vmatmul.mubr.f32.gmra.mrb[0].mxu0 %v622
        %v753 = vpop.f32.mrb[0].mxu0
        %v754 = vadd.f32 %v591, %v753
        %v755 = vpop.f32.mrb[0].mxu0
        %756 = vmatprep.mubr.f32.mxu0 0.0
        %757 = vmatmul.mubr.f32.gmra.mrb[0].mxu0 %v625
        %v758 = vpop.f32.mrb[0].mxu0
        %v759 = vadd.f32 %v591, %v758
        %v760 = vpop.f32.mrb[0].mxu0
        %761 = vmatprep.mubr.f32.mxu0 0.0
        %762 = vmatmul.mubr.f32.gmra.mrb[0].mxu0 %v628
        %v763 = vpop.f32.mrb[0].mxu0
        %v764 = vadd.f32 %v591, %v763
        %v765 = vpop.f32.mrb[0].mxu0
        %766 = vmatprep.mubr.f32.mxu0 0.0
        %767 = vmatmul.mubr.f32.gmra.mrb[0].mxu0 %v631
        %v768 = vpop.f32.mrb[0].mxu0
        %v769 = vadd.f32 %v591, %v768
        %v770 = vpop.f32.mrb[0].mxu0
        %771 = vmatprep.mubr.f32.mxu0 0.0
        %772 = vmatmul.mubr.f32.gmra.mrb[0].mxu0 %v634
        %v773 = vpop.f32.mrb[0].mxu0
        %v774 = vadd.f32 %v591, %v773
        %v775 = vpop.f32.mrb[0].mxu0
        %776 = vmatprep.mubr.f32.mxu0 0.0
        %777 = vmatmul.mubr.f32.gmra.mrb[0].mxu0 %v637
        %v778 = vpop.f32.mrb[0].mxu0
        %v779 = vadd.f32 %v591, %v778
        %v780 = vpop.f32.mrb[0].mxu0
        %781 = vmatprep.mubr.f32.mxu0 0.0
        %782 = vmatmul.mubr.f32.gmra.mrb[0].mxu0 %v640
        %v783 = vpop.f32.mrb[0].mxu0
        %v784 = vadd.f32 %v591, %v783
        %v785 = vpop.f32.mrb[0].mxu0
        %786 = vdwg.mxu0
        %v787 = vmax.f32 %v709, 0.0
        %v788 = vmax.f32 %v714, 0.0
        %v789 = vmax.f32 %v719, 0.0
        %v790 = vmax.f32 %v724, 0.0
        %v791 = vmax.f32 %v729, 0.0
        %v792 = vmax.f32 %v734, 0.0
        %v793 = vmax.f32 %v739, 0.0
        %v794 = vmax.f32 %v744, 0.0
        %v795 = vmax.f32 %v749, 0.0
        %v796 = vmax.f32 %v754, 0.0
        %v797 = vmax.f32 %v759, 0.0
        %v798 = vmax.f32 %v764, 0.0
        %v799 = vmax.f32 %v769, 0.0
        %v800 = vmax.f32 %v774, 0.0
        %v801 = vmax.f32 %v779, 0.0
        %v802 = vmax.f32 %v784, 0.0
        %vm819 = vcmask 1040384
        %v820 = vrot.slane %v787, 7
        %v821 = vrot.slane %v788, 7
        %v822 = vsel %vm819, %v820, %v821
        %v823 = vrot.slane %v789, 7
        %v824 = vrot.slane %v790, 7
        %v825 = vsel %vm819, %v823, %v824
        %v826 = vrot.slane %v791, 7
        %v827 = vrot.slane %v792, 7
        %v828 = vsel %vm819, %v826, %v827
        %v829 = vrot.slane %v793, 7
        %v830 = vrot.slane %v794, 7
        %v831 = vsel %vm819, %v829, %v830
        %v832 = vrot.slane %v795, 7
        %v833 = vrot.slane %v796, 7
        %v834 = vsel %vm819, %v832, %v833
        %v835 = vrot.slane %v797, 7
        %v836 = vrot.slane %v798, 7
        %v837 = vsel %vm819, %v835, %v836
        %v838 = vrot.slane %v799, 7
        %v839 = vrot.slane %v800, 7
        %v840 = vsel %vm819, %v838, %v839
        %v841 = vrot.slane %v801, 7
        %v842 = vrot.slane %v802, 7
        %v843 = vsel %vm819, %v841, %v842
        %v868 = vsel %vm819, 0.0, %v820
        %v869 = vsel %vm819, 0.0, %v823
        %v870 = vsel %vm819, 0.0, %v826
        %v871 = vsel %vm819, 0.0, %v829
        %v872 = vsel %vm819, 0.0, %v832
        %v873 = vsel %vm819, 0.0, %v835
        %v874 = vsel %vm819, 0.0, %v838
        %v875 = vsel %vm819, 0.0, %v841
        %v876 = vsel %vm819, %v821, 0.0
        %v877 = vsel %vm819, %v824, 0.0
        %v878 = vsel %vm819, %v827, 0.0
        %v879 = vsel %vm819, %v830, 0.0
        %v880 = vsel %vm819, %v833, 0.0
        %v881 = vsel %vm819, %v836, 0.0
        %v882 = vsel %vm819, %v839, 0.0
        %v883 = vsel %vm819, %v842, 0.0
        %s884 = scalar_lea.vmem [#allocation2], 24
        %vm885 = vcmask 31744
        %886 = vst.msk [vmem:[%s884] sm:$0xff] %vm885, %v868
        %887 = vst.msk [vmem:[%s884 + $0x8] sm:$0xff] %vm885, %v822
        %vm888 = vcmask 25600
        %889 = vst.msk [vmem:[%s884 + $0x10] sm:$0x3] %vm888, %v876
        %890 = vst.msk [vmem:[%s884 + $0x18] sm:$0xff] %vm885, %v869
        %891 = vst.msk [vmem:[%s884 + $0x20] sm:$0xff] %vm885, %v825
        %892 = vst.msk [vmem:[%s884 + $0x28] sm:$0x3] %vm888, %v877
        %893 = vst.msk [vmem:[%s884 + $0x30] sm:$0xff] %vm885, %v870
        %894 = vst.msk [vmem:[%s884 + $0x38] sm:$0xff] %vm885, %v828
        %895 = vst.msk [vmem:[%s884 + $0x40] sm:$0x3] %vm888, %v878
        %896 = vst.msk [vmem:[%s884 + $0x48] sm:$0xff] %vm885, %v871
        %897 = vst.msk [vmem:[%s884 + $0x50] sm:$0xff] %vm885, %v831
        %898 = vst.msk [vmem:[%s884 + $0x58] sm:$0x3] %vm888, %v879
        %899 = vst.msk [vmem:[%s884 + $0x60] sm:$0xff] %vm885, %v872
        %900 = vst.msk [vmem:[%s884 + $0x68] sm:$0xff] %vm885, %v834
        %901 = vst.msk [vmem:[%s884 + $0x70] sm:$0x3] %vm888, %v880
        %902 = vst.msk [vmem:[%s884 + $0x78] sm:$0xff] %vm885, %v873
        %903 = vst.msk [vmem:[%s884 + $0x80] sm:$0xff] %vm885, %v837
        %904 = vst.msk [vmem:[%s884 + $0x88] sm:$0x3] %vm888, %v881
        %905 = vst.msk [vmem:[%s884 + $0x90] sm:$0xff] %vm885, %v874
        %906 = vst.msk [vmem:[%s884 + $0x98] sm:$0xff] %vm885, %v840
        %907 = vst.msk [vmem:[%s884 + $0xa0] sm:$0x3] %vm888, %v882
        %908 = vst.msk [vmem:[%s884 + $0xa8] sm:$0xff] %vm885, %v875
        %909 = vst.msk [vmem:[%s884 + $0xb0] sm:$0xff] %vm885, %v843
        %910 = vst.msk [vmem:[%s884 + $0xb8] sm:$0x3] %vm888, %v883
        %p911 = scmp.eq.s32.totalorder %s37, 0
        // Predicated region
        $region93: #{tpu_custom_call.1} parent=55 // pred_check
          %p912 = pneg %p911
        $region94: #{tpu_custom_call.1} parent=55 // pred_check_branch
          %914 = sbr.rel (%p912) target = $region96
        $region95: #{tpu_custom_call.1} parent=55 // pred_region
          %915 = vst.msk [vmem:[#allocation2] sm:$0xff] %vm885, 0.0
          %916 = vst.msk [vmem:[#allocation2 + $0x8] sm:$0xff] %vm885, 0.0
          %917 = vst.msk [vmem:[#allocation2 + $0x10] sm:$0x3] %vm888, 0.0
        $region96: #{tpu_custom_call.1} parent=55 // pred_fallthru
          _
        %p918 = scmp.gt.s32.totalorder %s37, 0
        // Predicated region
        $region97: #{tpu_custom_call.1} parent=55 // pred_check
          %p919 = pneg %p918
        $region98: #{tpu_custom_call.1} parent=55 // pred_check_branch
          %921 = sbr.rel (%p919) target = $region100
        $region99: #{tpu_custom_call.1} parent=55 // pred_region
          %v922 = vld [vmem:[%s480] sm:$0xff]
          %v923 = vld [vmem:[%s480 + $0x8] sm:$0xff]
          %v925 = vsel %vm593, %v922, 0
          %v928 = vsel %vm593, %v923, 0
          %930 = vmatprep.subr.mxu0 0.0
          %931 = vmatpush1.msra.mxu0 %v568
          %932 = vmatprep.subr.mxu0 0.0
          %933 = vmatpush1.msra.mxu0 %v569
          %934 = vmatprep.subr.mxu0 0.0
          %935 = vmatpush1.msra.mxu0 0.0
          %936 = vmatprep.subr.mxu0 0.0
          %937 = vmatpush1.msra.mxu0 0.0
          %938 = vmatprep.subr.mxu0 0.0
          %939 = vmatpush1.msra.mxu0 0.0
          %940 = vmatprep.subr.mxu0 0.0
          %941 = vmatpush1.msra.mxu0 0.0
          %942 = vmatprep.subr.mxu0 0.0
          %943 = vmatpush1.msra.mxu0 0.0
          %944 = vmatprep.subr.mxu0 0.0
          %945 = vmatpush1.msra.mxu0 0.0
          %946 = vmatprep.subr.mxu0 0.0
          %947 = vmatpush1.msra.mxu0 0.0
          %948 = vmatprep.subr.mxu0 0.0
          %949 = vmatpush1.msra.mxu0 0.0
          %950 = vmatprep.subr.mxu0 0.0
          %951 = vmatpush1.msra.mxu0 0.0
          %952 = vmatprep.subr.mxu0 0.0
          %953 = vmatpush1.msra.mxu0 0.0
          %954 = vmatprep.subr.mxu0 0.0
          %955 = vmatpush1.msra.mxu0 0.0
          %956 = vmatprep.subr.mxu0 0.0
          %957 = vmatpush1.msra.mxu0 0.0
          %958 = vmatprep.subr.mxu0 0.0
          %959 = vmatpush1.msra.mxu0 0.0
          %960 = vmatprep.subr.mxu0 0.0
          %961 = vmatpush1.msra.mxu0 0.0
          %962 = vmatprep.subr.mxu0 0.0
          %963 = vmatpush1.msra.mxu0 0.0
          %964 = vmatprep.subr.mxu0 0.0
          %965 = vmatpush1.msra.mxu0 0.0
          %966 = vmatprep.subr.mxu0 0.0
          %967 = vmatpush1.msra.mxu0 0.0
          %968 = vmatprep.subr.mxu0 0.0
          %969 = vmatpush1.msra.mxu0 0.0
          %970 = vmatprep.subr.mxu0 0.0
          %971 = vmatpush1.msra.mxu0 0.0
          %972 = vmatprep.subr.mxu0 0.0
          %973 = vmatpush1.msra.mxu0 0.0
          %974 = vmatprep.subr.mxu0 0.0
          %975 = vmatpush1.msra.mxu0 0.0
          %976 = vmatprep.subr.mxu0 0.0
          %977 = vmatpush1.msra.mxu0 0.0
          %978 = vmatprep.subr.mxu0 0.0
          %979 = vmatpush1.msra.mxu0 0.0
          %980 = vmatprep.subr.mxu0 0.0
          %981 = vmatpush1.msra.mxu0 0.0
          %982 = vmatprep.subr.mxu0 0.0
          %983 = vmatpush1.msra.mxu0 0.0
          %984 = vmatprep.subr.mxu0 0.0
          %985 = vmatpush1.msra.mxu0 0.0
          %986 = vmatprep.subr.mxu0 0.0
          %987 = vmatpush1.msra.mxu0 0.0
          %988 = vmatprep.subr.mxu0 0.0
          %989 = vmatpush1.msra.mxu0 0.0
          %990 = vmatprep.subr.mxu0 0.0
          %991 = vmatpush1.msra.mxu0 0.0
          %992 = vmatprep.subr.mxu0 0.0
          %993 = vmatpush1.msra.mxu0 0.0
          %994 = vmatprep.mubr.f32.mxu0 0.0
          %995 = vmatmul.mubr.f32.gmra.mrb[0].mxu0 %v925
          %v996 = vpop.f32.mrb[0].mxu0
          %v997 = vadd.f32 %v591, %v996
          %v998 = vpop.f32.mrb[0].mxu0
          %999 = vmatprep.mubr.f32.mxu0 0.0
          %1000 = vmatmul.mubr.f32.gmra.mrb[0].mxu0 %v928
          %v1001 = vpop.f32.mrb[0].mxu0
          %v1002 = vadd.f32 %v591, %v1001
          %v1003 = vpop.f32.mrb[0].mxu0
          %1004 = vdwg.mxu0
          %v1005 = vmax.f32 %v997, 0.0
          %v1006 = vmax.f32 %v1002, 0.0
          %v1009 = vrot.slane %v1005, 7
          %v1010 = vrot.slane %v1006, 7
          %v1011 = vsel %vm819, %v1009, %v1010
          %v1015 = vsel %vm819, 0.0, %v1009
          %v1016 = vsel %vm819, %v1010, 0.0
          %1017 = vst.msk [vmem:[#allocation2] sm:$0xff] %vm885, %v1015
          %1018 = vst.msk [vmem:[#allocation2 + $0x8] sm:$0xff] %vm885, %v1011
          %1019 = vst.msk [vmem:[#allocation2 + $0x10] sm:$0x3] %vm888, %v1016
        $region100: #{tpu_custom_call.1} parent=55 // pred_fallthru
          _
        %p1020 = scmp.eq.s32.totalorder %s37, 1
        // Predicated region
        $region101: #{tpu_custom_call.1} parent=55 // pred_check
          %p1021 = pneg %p1020
        $region102: #{tpu_custom_call.1} parent=55 // pred_check_branch
          %1023 = sbr.rel (%p1021) target = $region104
        $region103: #{tpu_custom_call.1} parent=55 // pred_region
          %s1024 = scalar_lea.vmem [#allocation2], 216
          %1025 = vst.msk [vmem:[%s1024] sm:$0xff] %vm885, 0.0
          %1026 = vst.msk [vmem:[%s1024 + $0x8] sm:$0xff] %vm885, 0.0
          %1027 = vst.msk [vmem:[%s1024 + $0x10] sm:$0x3] %vm888, 0.0
        $region104: #{tpu_custom_call.1} parent=55 // pred_fallthru
          _
        %p1028 = scmp.lt.s32.totalorder %s37, 1
        // Predicated region
        $region105: #{tpu_custom_call.1} parent=55 // pred_check
          %p1029 = pneg %p1028
        $region106: #{tpu_custom_call.1} parent=55 // pred_check_branch
          %1031 = sbr.rel (%p1029) target = $region108
        $region107: #{tpu_custom_call.1} parent=55 // pred_region
          %v1032 = vld [vmem:[%s489] sm:$0xff]
          %v1033 = vld [vmem:[%s489 + $0x8] sm:$0xff]
          %v1035 = vsel %vm593, %v1032, 0
          %v1038 = vsel %vm593, %v1033, 0
          %1040 = vmatprep.subr.mxu0 0.0
          %1041 = vmatpush1.msra.mxu0 %v568
          %1042 = vmatprep.subr.mxu0 0.0
          %1043 = vmatpush1.msra.mxu0 %v569
          %1044 = vmatprep.subr.mxu0 0.0
          %1045 = vmatpush1.msra.mxu0 0.0
          %1046 = vmatprep.subr.mxu0 0.0
          %1047 = vmatpush1.msra.mxu0 0.0
          %1048 = vmatprep.subr.mxu0 0.0
          %1049 = vmatpush1.msra.mxu0 0.0
          %1050 = vmatprep.subr.mxu0 0.0
          %1051 = vmatpush1.msra.mxu0 0.0
          %1052 = vmatprep.subr.mxu0 0.0
          %1053 = vmatpush1.msra.mxu0 0.0
          %1054 = vmatprep.subr.mxu0 0.0
          %1055 = vmatpush1.msra.mxu0 0.0
          %1056 = vmatprep.subr.mxu0 0.0
          %1057 = vmatpush1.msra.mxu0 0.0
          %1058 = vmatprep.subr.mxu0 0.0
          %1059 = vmatpush1.msra.mxu0 0.0
          %1060 = vmatprep.subr.mxu0 0.0
          %1061 = vmatpush1.msra.mxu0 0.0
          %1062 = vmatprep.subr.mxu0 0.0
          %1063 = vmatpush1.msra.mxu0 0.0
          %1064 = vmatprep.subr.mxu0 0.0
          %1065 = vmatpush1.msra.mxu0 0.0
          %1066 = vmatprep.subr.mxu0 0.0
          %1067 = vmatpush1.msra.mxu0 0.0
          %1068 = vmatprep.subr.mxu0 0.0
          %1069 = vmatpush1.msra.mxu0 0.0
          %1070 = vmatprep.subr.mxu0 0.0
          %1071 = vmatpush1.msra.mxu0 0.0
          %1072 = vmatprep.subr.mxu0 0.0
          %1073 = vmatpush1.msra.mxu0 0.0
          %1074 = vmatprep.subr.mxu0 0.0
          %1075 = vmatpush1.msra.mxu0 0.0
          %1076 = vmatprep.subr.mxu0 0.0
          %1077 = vmatpush1.msra.mxu0 0.0
          %1078 = vmatprep.subr.mxu0 0.0
          %1079 = vmatpush1.msra.mxu0 0.0
          %1080 = vmatprep.subr.mxu0 0.0
          %1081 = vmatpush1.msra.mxu0 0.0
          %1082 = vmatprep.subr.mxu0 0.0
          %1083 = vmatpush1.msra.mxu0 0.0
          %1084 = vmatprep.subr.mxu0 0.0
          %1085 = vmatpush1.msra.mxu0 0.0
          %1086 = vmatprep.subr.mxu0 0.0
          %1087 = vmatpush1.msra.mxu0 0.0
          %1088 = vmatprep.subr.mxu0 0.0
          %1089 = vmatpush1.msra.mxu0 0.0
          %1090 = vmatprep.subr.mxu0 0.0
          %1091 = vmatpush1.msra.mxu0 0.0
          %1092 = vmatprep.subr.mxu0 0.0
          %1093 = vmatpush1.msra.mxu0 0.0
          %1094 = vmatprep.subr.mxu0 0.0
          %1095 = vmatpush1.msra.mxu0 0.0
          %1096 = vmatprep.subr.mxu0 0.0
          %1097 = vmatpush1.msra.mxu0 0.0
          %1098 = vmatprep.subr.mxu0 0.0
          %1099 = vmatpush1.msra.mxu0 0.0
          %1100 = vmatprep.subr.mxu0 0.0
          %1101 = vmatpush1.msra.mxu0 0.0
          %1102 = vmatprep.subr.mxu0 0.0
          %1103 = vmatpush1.msra.mxu0 0.0
          %1104 = vmatprep.mubr.f32.mxu0 0.0
          %1105 = vmatmul.mubr.f32.gmra.mrb[0].mxu0 %v1035
          %v1106 = vpop.f32.mrb[0].mxu0
          %v1107 = vadd.f32 %v591, %v1106
          %v1108 = vpop.f32.mrb[0].mxu0
          %1109 = vmatprep.mubr.f32.mxu0 0.0
          %1110 = vmatmul.mubr.f32.gmra.mrb[0].mxu0 %v1038
          %v1111 = vpop.f32.mrb[0].mxu0
          %v1112 = vadd.f32 %v591, %v1111
          %v1113 = vpop.f32.mrb[0].mxu0
          %1114 = vdwg.mxu0
          %v1115 = vmax.f32 %v1107, 0.0
          %v1116 = vmax.f32 %v1112, 0.0
          %v1119 = vrot.slane %v1115, 7
          %v1120 = vrot.slane %v1116, 7
          %v1121 = vsel %vm819, %v1119, %v1120
          %v1125 = vsel %vm819, 0.0, %v1119
          %v1126 = vsel %vm819, %v1120, 0.0
          %s1127 = scalar_lea.vmem [#allocation2], 216
          %1128 = vst.msk [vmem:[%s1127] sm:$0xff] %vm885, %v1125
          %1129 = vst.msk [vmem:[%s1127 + $0x8] sm:$0xff] %vm885, %v1121
          %1130 = vst.msk [vmem:[%s1127 + $0x10] sm:$0x3] %vm888, %v1126
        $region108: #{tpu_custom_call.1} parent=55 // pred_fallthru
          _
        %v1131 = vld [vmem:[#allocation2] sm:$0xff]
        %v1132 = vld [vmem:[#allocation2 + $0x8] sm:$0xff]
        %v1133 = vld [vmem:[#allocation2 + $0x18] sm:$0xff]
        %v1134 = vld [vmem:[#allocation2 + $0x20] sm:$0xff]
        %v1135 = vld [vmem:[#allocation2 + $0x30] sm:$0xff]
        %v1136 = vld [vmem:[#allocation2 + $0x38] sm:$0xff]
        %v1137 = vld [vmem:[#allocation2 + $0x48] sm:$0xff]
        %v1138 = vld [vmem:[#allocation2 + $0x50] sm:$0xff]
        %v1139 = vld [vmem:[#allocation2 + $0x60] sm:$0xff]
        %v1140 = vld [vmem:[#allocation2 + $0x68] sm:$0xff]
        %v1141 = vld [vmem:[#allocation2 + $0x78] sm:$0xff]
        %v1142 = vld [vmem:[#allocation2 + $0x80] sm:$0xff]
        %v1143 = vld [vmem:[#allocation2 + $0x90] sm:$0xff]
        %v1144 = vld [vmem:[#allocation2 + $0x98] sm:$0xff]
        %v1145 = vld [vmem:[#allocation2 + $0xa8] sm:$0xff]
        %v1146 = vld [vmem:[#allocation2 + $0xb0] sm:$0xff]
        %v1147 = vld [vmem:[#allocation2 + $0x1] sm:$0xff]
        %v1148 = vld [vmem:[#allocation2 + $0x9] sm:$0xff]
        %v1149 = vld [vmem:[#allocation2 + $0x19] sm:$0xff]
        %v1150 = vld [vmem:[#allocation2 + $0x21] sm:$0xff]
        %v1151 = vld [vmem:[#allocation2 + $0x31] sm:$0xff]
        %v1152 = vld [vmem:[#allocation2 + $0x39] sm:$0xff]
        %v1153 = vld [vmem:[#allocation2 + $0x49] sm:$0xff]
        %v1154 = vld [vmem:[#allocation2 + $0x51] sm:$0xff]
        %v1155 = vld [vmem:[#allocation2 + $0x61] sm:$0xff]
        %v1156 = vld [vmem:[#allocation2 + $0x69] sm:$0xff]
        %v1157 = vld [vmem:[#allocation2 + $0x79] sm:$0xff]
        %v1158 = vld [vmem:[#allocation2 + $0x81] sm:$0xff]
        %v1159 = vld [vmem:[#allocation2 + $0x91] sm:$0xff]
        %v1160 = vld [vmem:[#allocation2 + $0x99] sm:$0xff]
        %v1161 = vld [vmem:[#allocation2 + $0xa9] sm:$0xff]
        %v1162 = vld [vmem:[#allocation2 + $0xb1] sm:$0xff]
        %v1163 = vld [vmem:[#allocation2 + $0x2] sm:$0xff]
        %v1164 = vld [vmem:[#allocation2 + $0xa] sm:$0xff]
        %v1165 = vld [vmem:[#allocation2 + $0x1a] sm:$0xff]
        %v1166 = vld [vmem:[#allocation2 + $0x22] sm:$0xff]
        %v1167 = vld [vmem:[#allocation2 + $0x32] sm:$0xff]
        %v1168 = vld [vmem:[#allocation2 + $0x3a] sm:$0xff]
        %v1169 = vld [vmem:[#allocation2 + $0x4a] sm:$0xff]
        %v1170 = vld [vmem:[#allocation2 + $0x52] sm:$0xff]
        %v1171 = vld [vmem:[#allocation2 + $0x62] sm:$0xff]
        %v1172 = vld [vmem:[#allocation2 + $0x6a] sm:$0xff]
        %v1173 = vld [vmem:[#allocation2 + $0x7a] sm:$0xff]
        %v1174 = vld [vmem:[#allocation2 + $0x82] sm:$0xff]
        %v1175 = vld [vmem:[#allocation2 + $0x92] sm:$0xff]
        %v1176 = vld [vmem:[#allocation2 + $0x9a] sm:$0xff]
        %v1177 = vld [vmem:[#allocation2 + $0xaa] sm:$0xff]
        %v1178 = vld [vmem:[#allocation2 + $0xb2] sm:$0xff]
        %v1179 = vld [vmem:[%s884] sm:$0xff]
        %v1180 = vld [vmem:[%s884 + $0x8] sm:$0xff]
        %v1181 = vld [vmem:[%s884 + $0x18] sm:$0xff]
        %v1182 = vld [vmem:[%s884 + $0x20] sm:$0xff]
        %v1183 = vld [vmem:[%s884 + $0x30] sm:$0xff]
        %v1184 = vld [vmem:[%s884 + $0x38] sm:$0xff]
        %v1185 = vld [vmem:[%s884 + $0x48] sm:$0xff]
        %v1186 = vld [vmem:[%s884 + $0x50] sm:$0xff]
        %v1187 = vld [vmem:[%s884 + $0x60] sm:$0xff]
        %v1188 = vld [vmem:[%s884 + $0x68] sm:$0xff]
        %v1189 = vld [vmem:[%s884 + $0x78] sm:$0xff]
        %v1190 = vld [vmem:[%s884 + $0x80] sm:$0xff]
        %v1191 = vld [vmem:[%s884 + $0x90] sm:$0xff]
        %v1192 = vld [vmem:[%s884 + $0x98] sm:$0xff]
        %v1193 = vld [vmem:[%s884 + $0xa8] sm:$0xff]
        %v1194 = vld [vmem:[%s884 + $0xb0] sm:$0xff]
        %v1195 = vld [vmem:[%s884 + $0x1] sm:$0xff]
        %v1196 = vld [vmem:[%s884 + $0x9] sm:$0xff]
        %v1197 = vld [vmem:[%s884 + $0x19] sm:$0xff]
        %v1198 = vld [vmem:[%s884 + $0x21] sm:$0xff]
        %v1199 = vld [vmem:[%s884 + $0x31] sm:$0xff]
        %v1200 = vld [vmem:[%s884 + $0x39] sm:$0xff]
        %v1201 = vld [vmem:[%s884 + $0x49] sm:$0xff]
        %v1202 = vld [vmem:[%s884 + $0x51] sm:$0xff]
        %v1203 = vld [vmem:[%s884 + $0x61] sm:$0xff]
        %v1204 = vld [vmem:[%s884 + $0x69] sm:$0xff]
        %v1205 = vld [vmem:[%s884 + $0x79] sm:$0xff]
        %v1206 = vld [vmem:[%s884 + $0x81] sm:$0xff]
        %v1207 = vld [vmem:[%s884 + $0x91] sm:$0xff]
        %v1208 = vld [vmem:[%s884 + $0x99] sm:$0xff]
        %v1209 = vld [vmem:[%s884 + $0xa9] sm:$0xff]
        %v1210 = vld [vmem:[%s884 + $0xb1] sm:$0xff]
        %v1211 = vld [vmem:[%s884 + $0x2] sm:$0xff]
        %v1212 = vld [vmem:[%s884 + $0xa] sm:$0xff]
        %v1213 = vld [vmem:[%s884 + $0x1a] sm:$0xff]
        %v1214 = vld [vmem:[%s884 + $0x22] sm:$0xff]
        %v1215 = vld [vmem:[%s884 + $0x32] sm:$0xff]
        %v1216 = vld [vmem:[%s884 + $0x3a] sm:$0xff]
        %v1217 = vld [vmem:[%s884 + $0x4a] sm:$0xff]
        %v1218 = vld [vmem:[%s884 + $0x52] sm:$0xff]
        %v1219 = vld [vmem:[%s884 + $0x62] sm:$0xff]
        %v1220 = vld [vmem:[%s884 + $0x6a] sm:$0xff]
        %v1221 = vld [vmem:[%s884 + $0x7a] sm:$0xff]
        %v1222 = vld [vmem:[%s884 + $0x82] sm:$0xff]
        %v1223 = vld [vmem:[%s884 + $0x92] sm:$0xff]
        %v1224 = vld [vmem:[%s884 + $0x9a] sm:$0xff]
        %v1225 = vld [vmem:[%s884 + $0xaa] sm:$0xff]
        %v1226 = vld [vmem:[%s884 + $0xb2] sm:$0xff]
        %s1227 = scalar_lea.vmem [#allocation2], 48
        %v1228 = vld [vmem:[%s1227] sm:$0xff]
        %v1229 = vld [vmem:[%s1227 + $0x8] sm:$0xff]
        %v1230 = vld [vmem:[%s1227 + $0x18] sm:$0xff]
        %v1231 = vld [vmem:[%s1227 + $0x20] sm:$0xff]
        %v1232 = vld [vmem:[%s1227 + $0x30] sm:$0xff]
        %v1233 = vld [vmem:[%s1227 + $0x38] sm:$0xff]
        %v1234 = vld [vmem:[%s1227 + $0x48] sm:$0xff]
        %v1235 = vld [vmem:[%s1227 + $0x50] sm:$0xff]
        %v1236 = vld [vmem:[%s1227 + $0x60] sm:$0xff]
        %v1237 = vld [vmem:[%s1227 + $0x68] sm:$0xff]
        %v1238 = vld [vmem:[%s1227 + $0x78] sm:$0xff]
        %v1239 = vld [vmem:[%s1227 + $0x80] sm:$0xff]
        %v1240 = vld [vmem:[%s1227 + $0x90] sm:$0xff]
        %v1241 = vld [vmem:[%s1227 + $0x98] sm:$0xff]
        %v1242 = vld [vmem:[%s1227 + $0xa8] sm:$0xff]
        %v1243 = vld [vmem:[%s1227 + $0xb0] sm:$0xff]
        %v1244 = vld [vmem:[%s1227 + $0x1] sm:$0xff]
        %v1245 = vld [vmem:[%s1227 + $0x9] sm:$0xff]
        %v1246 = vld [vmem:[%s1227 + $0x19] sm:$0xff]
        %v1247 = vld [vmem:[%s1227 + $0x21] sm:$0xff]
        %v1248 = vld [vmem:[%s1227 + $0x31] sm:$0xff]
        %v1249 = vld [vmem:[%s1227 + $0x39] sm:$0xff]
        %v1250 = vld [vmem:[%s1227 + $0x49] sm:$0xff]
        %v1251 = vld [vmem:[%s1227 + $0x51] sm:$0xff]
        %v1252 = vld [vmem:[%s1227 + $0x61] sm:$0xff]
        %v1253 = vld [vmem:[%s1227 + $0x69] sm:$0xff]
        %v1254 = vld [vmem:[%s1227 + $0x79] sm:$0xff]
        %v1255 = vld [vmem:[%s1227 + $0x81] sm:$0xff]
        %v1256 = vld [vmem:[%s1227 + $0x91] sm:$0xff]
        %v1257 = vld [vmem:[%s1227 + $0x99] sm:$0xff]
        %v1258 = vld [vmem:[%s1227 + $0xa9] sm:$0xff]
        %v1259 = vld [vmem:[%s1227 + $0xb1] sm:$0xff]
        %v1260 = vld [vmem:[%s1227 + $0x2] sm:$0xff]
        %v1261 = vld [vmem:[%s1227 + $0xa] sm:$0xff]
        %v1262 = vld [vmem:[%s1227 + $0x1a] sm:$0xff]
        %v1263 = vld [vmem:[%s1227 + $0x22] sm:$0xff]
        %v1264 = vld [vmem:[%s1227 + $0x32] sm:$0xff]
        %v1265 = vld [vmem:[%s1227 + $0x3a] sm:$0xff]
        %v1266 = vld [vmem:[%s1227 + $0x4a] sm:$0xff]
        %v1267 = vld [vmem:[%s1227 + $0x52] sm:$0xff]
        %v1268 = vld [vmem:[%s1227 + $0x62] sm:$0xff]
        %v1269 = vld [vmem:[%s1227 + $0x6a] sm:$0xff]
        %v1270 = vld [vmem:[%s1227 + $0x7a] sm:$0xff]
        %v1271 = vld [vmem:[%s1227 + $0x82] sm:$0xff]
        %v1272 = vld [vmem:[%s1227 + $0x92] sm:$0xff]
        %v1273 = vld [vmem:[%s1227 + $0x9a] sm:$0xff]
        %v1274 = vld [vmem:[%s1227 + $0xaa] sm:$0xff]
        %v1275 = vld [vmem:[%s1227 + $0xb2] sm:$0xff]
        %1292 = vrot.lane.b32.xlu0 %v1147, 4
        %v1293 = vpop.permute.xlu0 %1292
        %1294 = vrot.lane.b32.xlu0 %v1148, 4
        %v1295 = vpop.permute.xlu0 %1294
        %1296 = vrot.lane.b32.xlu0 %v1149, 4
        %v1297 = vpop.permute.xlu0 %1296
        %1298 = vrot.lane.b32.xlu0 %v1150, 4
        %v1299 = vpop.permute.xlu0 %1298
        %1300 = vrot.lane.b32.xlu0 %v1151, 4
        %v1301 = vpop.permute.xlu0 %1300
        %1302 = vrot.lane.b32.xlu0 %v1152, 4
        %v1303 = vpop.permute.xlu0 %1302
        %1304 = vrot.lane.b32.xlu0 %v1153, 4
        %v1305 = vpop.permute.xlu0 %1304
        %1306 = vrot.lane.b32.xlu0 %v1154, 4
        %v1307 = vpop.permute.xlu0 %1306
        %1308 = vrot.lane.b32.xlu0 %v1155, 4
        %v1309 = vpop.permute.xlu0 %1308
        %1310 = vrot.lane.b32.xlu0 %v1156, 4
        %v1311 = vpop.permute.xlu0 %1310
        %1312 = vrot.lane.b32.xlu0 %v1157, 4
        %v1313 = vpop.permute.xlu0 %1312
        %1314 = vrot.lane.b32.xlu0 %v1158, 4
        %v1315 = vpop.permute.xlu0 %1314
        %1316 = vrot.lane.b32.xlu0 %v1159, 4
        %v1317 = vpop.permute.xlu0 %1316
        %1318 = vrot.lane.b32.xlu0 %v1160, 4
        %v1319 = vpop.permute.xlu0 %1318
        %1320 = vrot.lane.b32.xlu0 %v1161, 4
        %v1321 = vpop.permute.xlu0 %1320
        %1322 = vrot.lane.b32.xlu0 %v1162, 4
        %v1323 = vpop.permute.xlu0 %1322
        %1356 = vrot.lane.b32.xlu0 %v1163, 8
        %v1357 = vpop.permute.xlu0 %1356
        %1358 = vrot.lane.b32.xlu0 %v1164, 8
        %v1359 = vpop.permute.xlu0 %1358
        %1360 = vrot.lane.b32.xlu0 %v1165, 8
        %v1361 = vpop.permute.xlu0 %1360
        %1362 = vrot.lane.b32.xlu0 %v1166, 8
        %v1363 = vpop.permute.xlu0 %1362
        %1364 = vrot.lane.b32.xlu0 %v1167, 8
        %v1365 = vpop.permute.xlu0 %1364
        %1366 = vrot.lane.b32.xlu0 %v1168, 8
        %v1367 = vpop.permute.xlu0 %1366
        %1368 = vrot.lane.b32.xlu0 %v1169, 8
        %v1369 = vpop.permute.xlu0 %1368
        %1370 = vrot.lane.b32.xlu0 %v1170, 8
        %v1371 = vpop.permute.xlu0 %1370
        %1372 = vrot.lane.b32.xlu0 %v1171, 8
        %v1373 = vpop.permute.xlu0 %1372
        %1374 = vrot.lane.b32.xlu0 %v1172, 8
        %v1375 = vpop.permute.xlu0 %1374
        %1376 = vrot.lane.b32.xlu0 %v1173, 8
        %v1377 = vpop.permute.xlu0 %1376
        %1378 = vrot.lane.b32.xlu0 %v1174, 8
        %v1379 = vpop.permute.xlu0 %1378
        %1380 = vrot.lane.b32.xlu0 %v1175, 8
        %v1381 = vpop.permute.xlu0 %1380
        %1382 = vrot.lane.b32.xlu0 %v1176, 8
        %v1383 = vpop.permute.xlu0 %1382
        %1384 = vrot.lane.b32.xlu0 %v1177, 8
        %v1385 = vpop.permute.xlu0 %1384
        %1386 = vrot.lane.b32.xlu0 %v1178, 8
        %v1387 = vpop.permute.xlu0 %1386
        %1420 = vrot.lane.b32.xlu0 %v1179, 12
        %v1421 = vpop.permute.xlu0 %1420
        %1422 = vrot.lane.b32.xlu0 %v1180, 12
        %v1423 = vpop.permute.xlu0 %1422
        %1424 = vrot.lane.b32.xlu0 %v1181, 12
        %v1425 = vpop.permute.xlu0 %1424
        %1426 = vrot.lane.b32.xlu0 %v1182, 12
        %v1427 = vpop.permute.xlu0 %1426
        %1428 = vrot.lane.b32.xlu0 %v1183, 12
        %v1429 = vpop.permute.xlu0 %1428
        %1430 = vrot.lane.b32.xlu0 %v1184, 12
        %v1431 = vpop.permute.xlu0 %1430
        %1432 = vrot.lane.b32.xlu0 %v1185, 12
        %v1433 = vpop.permute.xlu0 %1432
        %1434 = vrot.lane.b32.xlu0 %v1186, 12
        %v1435 = vpop.permute.xlu0 %1434
        %1436 = vrot.lane.b32.xlu0 %v1187, 12
        %v1437 = vpop.permute.xlu0 %1436
        %1438 = vrot.lane.b32.xlu0 %v1188, 12
        %v1439 = vpop.permute.xlu0 %1438
        %1440 = vrot.lane.b32.xlu0 %v1189, 12
        %v1441 = vpop.permute.xlu0 %1440
        %1442 = vrot.lane.b32.xlu0 %v1190, 12
        %v1443 = vpop.permute.xlu0 %1442
        %1444 = vrot.lane.b32.xlu0 %v1191, 12
        %v1445 = vpop.permute.xlu0 %1444
        %1446 = vrot.lane.b32.xlu0 %v1192, 12
        %v1447 = vpop.permute.xlu0 %1446
        %1448 = vrot.lane.b32.xlu0 %v1193, 12
        %v1449 = vpop.permute.xlu0 %1448
        %1450 = vrot.lane.b32.xlu0 %v1194, 12
        %v1451 = vpop.permute.xlu0 %1450
        %1484 = vrot.lane.b32.xlu0 %v1195, 16
        %v1485 = vpop.permute.xlu0 %1484
        %1486 = vrot.lane.b32.xlu0 %v1196, 16
        %v1487 = vpop.permute.xlu0 %1486
        %1488 = vrot.lane.b32.xlu0 %v1197, 16
        %v1489 = vpop.permute.xlu0 %1488
        %1490 = vrot.lane.b32.xlu0 %v1198, 16
        %v1491 = vpop.permute.xlu0 %1490
        %1492 = vrot.lane.b32.xlu0 %v1199, 16
        %v1493 = vpop.permute.xlu0 %1492
        %1494 = vrot.lane.b32.xlu0 %v1200, 16
        %v1495 = vpop.permute.xlu0 %1494
        %1496 = vrot.lane.b32.xlu0 %v1201, 16
        %v1497 = vpop.permute.xlu0 %1496
        %1498 = vrot.lane.b32.xlu0 %v1202, 16
        %v1499 = vpop.permute.xlu0 %1498
        %1500 = vrot.lane.b32.xlu0 %v1203, 16
        %v1501 = vpop.permute.xlu0 %1500
        %1502 = vrot.lane.b32.xlu0 %v1204, 16
        %v1503 = vpop.permute.xlu0 %1502
        %1504 = vrot.lane.b32.xlu0 %v1205, 16
        %v1505 = vpop.permute.xlu0 %1504
        %1506 = vrot.lane.b32.xlu0 %v1206, 16
        %v1507 = vpop.permute.xlu0 %1506
        %1508 = vrot.lane.b32.xlu0 %v1207, 16
        %v1509 = vpop.permute.xlu0 %1508
        %1510 = vrot.lane.b32.xlu0 %v1208, 16
        %v1511 = vpop.permute.xlu0 %1510
        %1512 = vrot.lane.b32.xlu0 %v1209, 16
        %v1513 = vpop.permute.xlu0 %1512
        %1514 = vrot.lane.b32.xlu0 %v1210, 16
        %v1515 = vpop.permute.xlu0 %1514
        %1548 = vrot.lane.b32.xlu0 %v1211, 20
        %v1549 = vpop.permute.xlu0 %1548
        %1550 = vrot.lane.b32.xlu0 %v1212, 20
        %v1551 = vpop.permute.xlu0 %1550
        %1552 = vrot.lane.b32.xlu0 %v1213, 20
        %v1553 = vpop.permute.xlu0 %1552
        %1554 = vrot.lane.b32.xlu0 %v1214, 20
        %v1555 = vpop.permute.xlu0 %1554
        %1556 = vrot.lane.b32.xlu0 %v1215, 20
        %v1557 = vpop.permute.xlu0 %1556
        %1558 = vrot.lane.b32.xlu0 %v1216, 20
        %v1559 = vpop.permute.xlu0 %1558
        %1560 = vrot.lane.b32.xlu0 %v1217, 20
        %v1561 = vpop.permute.xlu0 %1560
        %1562 = vrot.lane.b32.xlu0 %v1218, 20
        %v1563 = vpop.permute.xlu0 %1562
        %1564 = vrot.lane.b32.xlu0 %v1219, 20
        %v1565 = vpop.permute.xlu0 %1564
        %1566 = vrot.lane.b32.xlu0 %v1220, 20
        %v1567 = vpop.permute.xlu0 %1566
        %1568 = vrot.lane.b32.xlu0 %v1221, 20
        %v1569 = vpop.permute.xlu0 %1568
        %1570 = vrot.lane.b32.xlu0 %v1222, 20
        %v1571 = vpop.permute.xlu0 %1570
        %1572 = vrot.lane.b32.xlu0 %v1223, 20
        %v1573 = vpop.permute.xlu0 %1572
        %1574 = vrot.lane.b32.xlu0 %v1224, 20
        %v1575 = vpop.permute.xlu0 %1574
        %1576 = vrot.lane.b32.xlu0 %v1225, 20
        %v1577 = vpop.permute.xlu0 %1576
        %1578 = vrot.lane.b32.xlu0 %v1226, 20
        %v1579 = vpop.permute.xlu0 %1578
        %1612 = vrot.lane.b32.xlu0 %v1228, 24
        %v1613 = vpop.permute.xlu0 %1612
        %1614 = vrot.lane.b32.xlu0 %v1229, 24
        %v1615 = vpop.permute.xlu0 %1614
        %1616 = vrot.lane.b32.xlu0 %v1230, 24
        %v1617 = vpop.permute.xlu0 %1616
        %1618 = vrot.lane.b32.xlu0 %v1231, 24
        %v1619 = vpop.permute.xlu0 %1618
        %1620 = vrot.lane.b32.xlu0 %v1232, 24
        %v1621 = vpop.permute.xlu0 %1620
        %1622 = vrot.lane.b32.xlu0 %v1233, 24
        %v1623 = vpop.permute.xlu0 %1622
        %1624 = vrot.lane.b32.xlu0 %v1234, 24
        %v1625 = vpop.permute.xlu0 %1624
        %1626 = vrot.lane.b32.xlu0 %v1235, 24
        %v1627 = vpop.permute.xlu0 %1626
        %1628 = vrot.lane.b32.xlu0 %v1236, 24
        %v1629 = vpop.permute.xlu0 %1628
        %1630 = vrot.lane.b32.xlu0 %v1237, 24
        %v1631 = vpop.permute.xlu0 %1630
        %1632 = vrot.lane.b32.xlu0 %v1238, 24
        %v1633 = vpop.permute.xlu0 %1632
        %1634 = vrot.lane.b32.xlu0 %v1239, 24
        %v1635 = vpop.permute.xlu0 %1634
        %1636 = vrot.lane.b32.xlu0 %v1240, 24
        %v1637 = vpop.permute.xlu0 %1636
        %1638 = vrot.lane.b32.xlu0 %v1241, 24
        %v1639 = vpop.permute.xlu0 %1638
        %1640 = vrot.lane.b32.xlu0 %v1242, 24
        %v1641 = vpop.permute.xlu0 %1640
        %1642 = vrot.lane.b32.xlu0 %v1243, 24
        %v1643 = vpop.permute.xlu0 %1642
        %1676 = vrot.lane.b32.xlu0 %v1244, 28
        %v1677 = vpop.permute.xlu0 %1676
        %1678 = vrot.lane.b32.xlu0 %v1245, 28
        %v1679 = vpop.permute.xlu0 %1678
        %1680 = vrot.lane.b32.xlu0 %v1246, 28
        %v1681 = vpop.permute.xlu0 %1680
        %1682 = vrot.lane.b32.xlu0 %v1247, 28
        %v1683 = vpop.permute.xlu0 %1682
        %1684 = vrot.lane.b32.xlu0 %v1248, 28
        %v1685 = vpop.permute.xlu0 %1684
        %1686 = vrot.lane.b32.xlu0 %v1249, 28
        %v1687 = vpop.permute.xlu0 %1686
        %1688 = vrot.lane.b32.xlu0 %v1250, 28
        %v1689 = vpop.permute.xlu0 %1688
        %1690 = vrot.lane.b32.xlu0 %v1251, 28
        %v1691 = vpop.permute.xlu0 %1690
        %1692 = vrot.lane.b32.xlu0 %v1252, 28
        %v1693 = vpop.permute.xlu0 %1692
        %1694 = vrot.lane.b32.xlu0 %v1253, 28
        %v1695 = vpop.permute.xlu0 %1694
        %1696 = vrot.lane.b32.xlu0 %v1254, 28
        %v1697 = vpop.permute.xlu0 %1696
        %1698 = vrot.lane.b32.xlu0 %v1255, 28
        %v1699 = vpop.permute.xlu0 %1698
        %1700 = vrot.lane.b32.xlu0 %v1256, 28
        %v1701 = vpop.permute.xlu0 %1700
        %1702 = vrot.lane.b32.xlu0 %v1257, 28
        %v1703 = vpop.permute.xlu0 %1702
        %1704 = vrot.lane.b32.xlu0 %v1258, 28
        %v1705 = vpop.permute.xlu0 %1704
        %1706 = vrot.lane.b32.xlu0 %v1259, 28
        %v1707 = vpop.permute.xlu0 %1706
        %1740 = vrot.lane.b32.xlu0 %v1260, 32
        %v1741 = vpop.permute.xlu0 %1740
        %1742 = vrot.lane.b32.xlu0 %v1261, 32
        %v1743 = vpop.permute.xlu0 %1742
        %1744 = vrot.lane.b32.xlu0 %v1262, 32
        %v1745 = vpop.permute.xlu0 %1744
        %1746 = vrot.lane.b32.xlu0 %v1263, 32
        %v1747 = vpop.permute.xlu0 %1746
        %1748 = vrot.lane.b32.xlu0 %v1264, 32
        %v1749 = vpop.permute.xlu0 %1748
        %1750 = vrot.lane.b32.xlu0 %v1265, 32
        %v1751 = vpop.permute.xlu0 %1750
        %1752 = vrot.lane.b32.xlu0 %v1266, 32
        %v1753 = vpop.permute.xlu0 %1752
        %1754 = vrot.lane.b32.xlu0 %v1267, 32
        %v1755 = vpop.permute.xlu0 %1754
        %1756 = vrot.lane.b32.xlu0 %v1268, 32
        %v1757 = vpop.permute.xlu0 %1756
        %1758 = vrot.lane.b32.xlu0 %v1269, 32
        %v1759 = vpop.permute.xlu0 %1758
        %1760 = vrot.lane.b32.xlu0 %v1270, 32
        %v1761 = vpop.permute.xlu0 %1760
        %1762 = vrot.lane.b32.xlu0 %v1271, 32
        %v1763 = vpop.permute.xlu0 %1762
        %1764 = vrot.lane.b32.xlu0 %v1272, 32
        %v1765 = vpop.permute.xlu0 %1764
        %1766 = vrot.lane.b32.xlu0 %v1273, 32
        %v1767 = vpop.permute.xlu0 %1766
        %1768 = vrot.lane.b32.xlu0 %v1274, 32
        %v1769 = vpop.permute.xlu0 %1768
        %1770 = vrot.lane.b32.xlu0 %v1275, 32
        %v1771 = vpop.permute.xlu0 %1770
        %v1788 = vsel %vm885, %v1131, %v1293
        %v1789 = vsel %vm885, %v1132, %v1295
        %v1790 = vsel %vm885, %v1133, %v1297
        %v1791 = vsel %vm885, %v1134, %v1299
        %v1792 = vsel %vm885, %v1135, %v1301
        %v1793 = vsel %vm885, %v1136, %v1303
        %v1794 = vsel %vm885, %v1137, %v1305
        %v1795 = vsel %vm885, %v1138, %v1307
        %v1796 = vsel %vm885, %v1139, %v1309
        %v1797 = vsel %vm885, %v1140, %v1311
        %v1798 = vsel %vm885, %v1141, %v1313
        %v1799 = vsel %vm885, %v1142, %v1315
        %v1800 = vsel %vm885, %v1143, %v1317
        %v1801 = vsel %vm885, %v1144, %v1319
        %v1802 = vsel %vm885, %v1145, %v1321
        %v1803 = vsel %vm885, %v1146, %v1323
        %vm1804 = vcmask 64512
        %v1805 = vsel %vm1804, %v1788, %v1357
        %v1806 = vsel %vm1804, %v1789, %v1359
        %v1807 = vsel %vm1804, %v1790, %v1361
        %v1808 = vsel %vm1804, %v1791, %v1363
        %v1809 = vsel %vm1804, %v1792, %v1365
        %v1810 = vsel %vm1804, %v1793, %v1367
        %v1811 = vsel %vm1804, %v1794, %v1369
        %v1812 = vsel %vm1804, %v1795, %v1371
        %v1813 = vsel %vm1804, %v1796, %v1373
        %v1814 = vsel %vm1804, %v1797, %v1375
        %v1815 = vsel %vm1804, %v1798, %v1377
        %v1816 = vsel %vm1804, %v1799, %v1379
        %v1817 = vsel %vm1804, %v1800, %v1381
        %v1818 = vsel %vm1804, %v1801, %v1383
        %v1819 = vsel %vm1804, %v1802, %v1385
        %v1820 = vsel %vm1804, %v1803, %v1387
        %vm1821 = vcmask 97280
        %v1822 = vsel %vm1821, %v1805, %v1421
        %v1823 = vsel %vm1821, %v1806, %v1423
        %v1824 = vsel %vm1821, %v1807, %v1425
        %v1825 = vsel %vm1821, %v1808, %v1427
        %v1826 = vsel %vm1821, %v1809, %v1429
        %v1827 = vsel %vm1821, %v1810, %v1431
        %v1828 = vsel %vm1821, %v1811, %v1433
        %v1829 = vsel %vm1821, %v1812, %v1435
        %v1830 = vsel %vm1821, %v1813, %v1437
        %v1831 = vsel %vm1821, %v1814, %v1439
        %v1832 = vsel %vm1821, %v1815, %v1441
        %v1833 = vsel %vm1821, %v1816, %v1443
        %v1834 = vsel %vm1821, %v1817, %v1445
        %v1835 = vsel %vm1821, %v1818, %v1447
        %v1836 = vsel %vm1821, %v1819, %v1449
        %v1837 = vsel %vm1821, %v1820, %v1451
        %v1838 = vsel %vm593, %v1822, %v1485
        %v1839 = vsel %vm593, %v1823, %v1487
        %v1840 = vsel %vm593, %v1824, %v1489
        %v1841 = vsel %vm593, %v1825, %v1491
        %v1842 = vsel %vm593, %v1826, %v1493
        %v1843 = vsel %vm593, %v1827, %v1495
        %v1844 = vsel %vm593, %v1828, %v1497
        %v1845 = vsel %vm593, %v1829, %v1499
        %v1846 = vsel %vm593, %v1830, %v1501
        %v1847 = vsel %vm593, %v1831, %v1503
        %v1848 = vsel %vm593, %v1832, %v1505
        %v1849 = vsel %vm593, %v1833, %v1507
        %v1850 = vsel %vm593, %v1834, %v1509
        %v1851 = vsel %vm593, %v1835, %v1511
        %v1852 = vsel %vm593, %v1836, %v1513
        %v1853 = vsel %vm593, %v1837, %v1515
        %vm1854 = vcmask 162816
        %v1855 = vsel %vm1854, %v1838, %v1549
        %v1856 = vsel %vm1854, %v1839, %v1551
        %v1857 = vsel %vm1854, %v1840, %v1553
        %v1858 = vsel %vm1854, %v1841, %v1555
        %v1859 = vsel %vm1854, %v1842, %v1557
        %v1860 = vsel %vm1854, %v1843, %v1559
        %v1861 = vsel %vm1854, %v1844, %v1561
        %v1862 = vsel %vm1854, %v1845, %v1563
        %v1863 = vsel %vm1854, %v1846, %v1565
        %v1864 = vsel %vm1854, %v1847, %v1567
        %v1865 = vsel %vm1854, %v1848, %v1569
        %v1866 = vsel %vm1854, %v1849, %v1571
        %v1867 = vsel %vm1854, %v1850, %v1573
        %v1868 = vsel %vm1854, %v1851, %v1575
        %v1869 = vsel %vm1854, %v1852, %v1577
        %v1870 = vsel %vm1854, %v1853, %v1579
        %vm1871 = vcmask 195584
        %v1872 = vsel %vm1871, %v1855, %v1613
        %v1873 = vsel %vm1871, %v1856, %v1615
        %v1874 = vsel %vm1871, %v1857, %v1617
        %v1875 = vsel %vm1871, %v1858, %v1619
        %v1876 = vsel %vm1871, %v1859, %v1621
        %v1877 = vsel %vm1871, %v1860, %v1623
        %v1878 = vsel %vm1871, %v1861, %v1625
        %v1879 = vsel %vm1871, %v1862, %v1627
        %v1880 = vsel %vm1871, %v1863, %v1629
        %v1881 = vsel %vm1871, %v1864, %v1631
        %v1882 = vsel %vm1871, %v1865, %v1633
        %v1883 = vsel %vm1871, %v1866, %v1635
        %v1884 = vsel %vm1871, %v1867, %v1637
        %v1885 = vsel %vm1871, %v1868, %v1639
        %v1886 = vsel %vm1871, %v1869, %v1641
        %v1887 = vsel %vm1871, %v1870, %v1643
        %vm1888 = vcmask 228352
        %v1889 = vsel %vm1888, %v1872, %v1677
        %v1890 = vsel %vm1888, %v1873, %v1679
        %v1891 = vsel %vm1888, %v1874, %v1681
        %v1892 = vsel %vm1888, %v1875, %v1683
        %v1893 = vsel %vm1888, %v1876, %v1685
        %v1894 = vsel %vm1888, %v1877, %v1687
        %v1895 = vsel %vm1888, %v1878, %v1689
        %v1896 = vsel %vm1888, %v1879, %v1691
        %v1897 = vsel %vm1888, %v1880, %v1693
        %v1898 = vsel %vm1888, %v1881, %v1695
        %v1899 = vsel %vm1888, %v1882, %v1697
        %v1900 = vsel %vm1888, %v1883, %v1699
        %v1901 = vsel %vm1888, %v1884, %v1701
        %v1902 = vsel %vm1888, %v1885, %v1703
        %v1903 = vsel %vm1888, %v1886, %v1705
        %v1904 = vsel %vm1888, %v1887, %v1707
        %vm1905 = vcmask 261120
        %v1906 = vsel %vm1905, %v1889, %v1741
        %v1907 = vsel %vm1905, %v1890, %v1743
        %v1908 = vsel %vm1905, %v1891, %v1745
        %v1909 = vsel %vm1905, %v1892, %v1747
        %v1910 = vsel %vm1905, %v1893, %v1749
        %v1911 = vsel %vm1905, %v1894, %v1751
        %v1912 = vsel %vm1905, %v1895, %v1753
        %v1913 = vsel %vm1905, %v1896, %v1755
        %v1914 = vsel %vm1905, %v1897, %v1757
        %v1915 = vsel %vm1905, %v1898, %v1759
        %v1916 = vsel %vm1905, %v1899, %v1761
        %v1917 = vsel %vm1905, %v1900, %v1763
        %v1918 = vsel %vm1905, %v1901, %v1765
        %v1919 = vsel %vm1905, %v1902, %v1767
        %v1920 = vsel %vm1905, %v1903, %v1769
        %v1921 = vsel %vm1905, %v1904, %v1771
        %v1922 = vld [vmem:[#allocation12] sm:$0xff]
        %v1923 = vld [vmem:[#allocation12 + $0x8] sm:$0xff]
        %v1924 = vld [vmem:[#allocation12 + $0x10] sm:$0xff]
        %v1925 = vld [vmem:[#allocation12 + $0x18] sm:$0xff]
        %v1926 = vld [vmem:[#allocation12 + $0x20] sm:$0xf]
        %v1927 = vld [vmem:[#allocation14] sm:$0x1]
        %v1929 = vlaneseq
        %v1930 = vshrl.u32 %v1929, 7
        %v1931 = vsub.s32 0, %v1930
        %v1932 = vrot.slane %v1927, %v1931
        %vm1934 = vcmask 293888
        %v1936 = vsel %vm1934, %v1906, 0
        %v1939 = vsel %vm1934, %v1907, 0
        %v1942 = vsel %vm1934, %v1908, 0
        %v1945 = vsel %vm1934, %v1909, 0
        %v1948 = vsel %vm1934, %v1910, 0
        %v1951 = vsel %vm1934, %v1911, 0
        %v1954 = vsel %vm1934, %v1912, 0
        %v1957 = vsel %vm1934, %v1913, 0
        %v1960 = vsel %vm1934, %v1914, 0
        %v1963 = vsel %vm1934, %v1915, 0
        %v1966 = vsel %vm1934, %v1916, 0
        %v1969 = vsel %vm1934, %v1917, 0
        %v1972 = vsel %vm1934, %v1918, 0
        %v1975 = vsel %vm1934, %v1919, 0
        %v1978 = vsel %vm1934, %v1920, 0
        %v1981 = vsel %vm1934, %v1921, 0
        %vm1983 = vcmask 1043456
        %v1985 = vsel %vm1983, %v1926, 0
        %1987 = vmatprep.subr.mxu0 0.0
        %1988 = vmatpush1.msra.mxu0 %v1922
        %1989 = vmatprep.subr.mxu0 0.0
        %1990 = vmatpush1.msra.mxu0 %v1923
        %1991 = vmatprep.subr.mxu0 0.0
        %1992 = vmatpush1.msra.mxu0 %v1924
        %1993 = vmatprep.subr.mxu0 0.0
        %1994 = vmatpush1.msra.mxu0 %v1925
        %1995 = vmatprep.subr.mxu0 0.0
        %1996 = vmatpush1.msra.mxu0 %v1985
        %1997 = vmatprep.subr.mxu0 0.0
        %1998 = vmatpush1.msra.mxu0 0.0
        %1999 = vmatprep.subr.mxu0 0.0
        %2000 = vmatpush1.msra.mxu0 0.0
        %2001 = vmatprep.subr.mxu0 0.0
        %2002 = vmatpush1.msra.mxu0 0.0
        %2003 = vmatprep.subr.mxu0 0.0
        %2004 = vmatpush1.msra.mxu0 0.0
        %2005 = vmatprep.subr.mxu0 0.0
        %2006 = vmatpush1.msra.mxu0 0.0
        %2007 = vmatprep.subr.mxu0 0.0
        %2008 = vmatpush1.msra.mxu0 0.0
        %2009 = vmatprep.subr.mxu0 0.0
        %2010 = vmatpush1.msra.mxu0 0.0
        %2011 = vmatprep.subr.mxu0 0.0
        %2012 = vmatpush1.msra.mxu0 0.0
        %2013 = vmatprep.subr.mxu0 0.0
        %2014 = vmatpush1.msra.mxu0 0.0
        %2015 = vmatprep.subr.mxu0 0.0
        %2016 = vmatpush1.msra.mxu0 0.0
        %2017 = vmatprep.subr.mxu0 0.0
        %2018 = vmatpush1.msra.mxu0 0.0
        %2019 = vmatprep.subr.mxu0 0.0
        %2020 = vmatpush1.msra.mxu0 0.0
        %2021 = vmatprep.subr.mxu0 0.0
        %2022 = vmatpush1.msra.mxu0 0.0
        %2023 = vmatprep.subr.mxu0 0.0
        %2024 = vmatpush1.msra.mxu0 0.0
        %2025 = vmatprep.subr.mxu0 0.0
        %2026 = vmatpush1.msra.mxu0 0.0
        %2027 = vmatprep.subr.mxu0 0.0
        %2028 = vmatpush1.msra.mxu0 0.0
        %2029 = vmatprep.subr.mxu0 0.0
        %2030 = vmatpush1.msra.mxu0 0.0
        %2031 = vmatprep.subr.mxu0 0.0
        %2032 = vmatpush1.msra.mxu0 0.0
        %2033 = vmatprep.subr.mxu0 0.0
        %2034 = vmatpush1.msra.mxu0 0.0
        %2035 = vmatprep.subr.mxu0 0.0
        %2036 = vmatpush1.msra.mxu0 0.0
        %2037 = vmatprep.subr.mxu0 0.0
        %2038 = vmatpush1.msra.mxu0 0.0
        %2039 = vmatprep.subr.mxu0 0.0
        %2040 = vmatpush1.msra.mxu0 0.0
        %2041 = vmatprep.subr.mxu0 0.0
        %2042 = vmatpush1.msra.mxu0 0.0
        %2043 = vmatprep.subr.mxu0 0.0
        %2044 = vmatpush1.msra.mxu0 0.0
        %2045 = vmatprep.subr.mxu0 0.0
        %2046 = vmatpush1.msra.mxu0 0.0
        %2047 = vmatprep.subr.mxu0 0.0
        %2048 = vmatpush1.msra.mxu0 0.0
        %2049 = vmatprep.subr.mxu0 0.0
        %2050 = vmatpush1.msra.mxu0 0.0
        %2051 = vmatprep.mubr.f32.mxu0 0.0
        %2052 = vmatmul.mubr.f32.gmra.mrb[0].mxu0 %v1936
        %v2053 = vpop.f32.mrb[0].mxu0
        %v2054 = vadd.f32 %v1932, %v2053
        %v2055 = vpop.f32.mrb[0].mxu0
        %2056 = vmatprep.mubr.f32.mxu0 0.0
        %2057 = vmatmul.mubr.f32.gmra.mrb[0].mxu0 %v1939
        %v2058 = vpop.f32.mrb[0].mxu0
        %v2059 = vadd.f32 %v1932, %v2058
        %v2060 = vpop.f32.mrb[0].mxu0
        %2061 = vmatprep.mubr.f32.mxu0 0.0
        %2062 = vmatmul.mubr.f32.gmra.mrb[0].mxu0 %v1942
        %v2063 = vpop.f32.mrb[0].mxu0
        %v2064 = vadd.f32 %v1932, %v2063
        %v2065 = vpop.f32.mrb[0].mxu0
        %2066 = vmatprep.mubr.f32.mxu0 0.0
        %2067 = vmatmul.mubr.f32.gmra.mrb[0].mxu0 %v1945
        %v2068 = vpop.f32.mrb[0].mxu0
        %v2069 = vadd.f32 %v1932, %v2068
        %v2070 = vpop.f32.mrb[0].mxu0
        %2071 = vmatprep.mubr.f32.mxu0 0.0
        %2072 = vmatmul.mubr.f32.gmra.mrb[0].mxu0 %v1948
        %v2073 = vpop.f32.mrb[0].mxu0
        %v2074 = vadd.f32 %v1932, %v2073
        %v2075 = vpop.f32.mrb[0].mxu0
        %2076 = vmatprep.mubr.f32.mxu0 0.0
        %2077 = vmatmul.mubr.f32.gmra.mrb[0].mxu0 %v1951
        %v2078 = vpop.f32.mrb[0].mxu0
        %v2079 = vadd.f32 %v1932, %v2078
        %v2080 = vpop.f32.mrb[0].mxu0
        %2081 = vmatprep.mubr.f32.mxu0 0.0
        %2082 = vmatmul.mubr.f32.gmra.mrb[0].mxu0 %v1954
        %v2083 = vpop.f32.mrb[0].mxu0
        %v2084 = vadd.f32 %v1932, %v2083
        %v2085 = vpop.f32.mrb[0].mxu0
        %2086 = vmatprep.mubr.f32.mxu0 0.0
        %2087 = vmatmul.mubr.f32.gmra.mrb[0].mxu0 %v1957
        %v2088 = vpop.f32.mrb[0].mxu0
        %v2089 = vadd.f32 %v1932, %v2088
        %v2090 = vpop.f32.mrb[0].mxu0
        %2091 = vmatprep.mubr.f32.mxu0 0.0
        %2092 = vmatmul.mubr.f32.gmra.mrb[0].mxu0 %v1960
        %v2093 = vpop.f32.mrb[0].mxu0
        %v2094 = vadd.f32 %v1932, %v2093
        %v2095 = vpop.f32.mrb[0].mxu0
        %2096 = vmatprep.mubr.f32.mxu0 0.0
        %2097 = vmatmul.mubr.f32.gmra.mrb[0].mxu0 %v1963
        %v2098 = vpop.f32.mrb[0].mxu0
        %v2099 = vadd.f32 %v1932, %v2098
        %v2100 = vpop.f32.mrb[0].mxu0
        %2101 = vmatprep.mubr.f32.mxu0 0.0
        %2102 = vmatmul.mubr.f32.gmra.mrb[0].mxu0 %v1966
        %v2103 = vpop.f32.mrb[0].mxu0
        %v2104 = vadd.f32 %v1932, %v2103
        %v2105 = vpop.f32.mrb[0].mxu0
        %2106 = vmatprep.mubr.f32.mxu0 0.0
        %2107 = vmatmul.mubr.f32.gmra.mrb[0].mxu0 %v1969
        %v2108 = vpop.f32.mrb[0].mxu0
        %v2109 = vadd.f32 %v1932, %v2108
        %v2110 = vpop.f32.mrb[0].mxu0
        %2111 = vmatprep.mubr.f32.mxu0 0.0
        %2112 = vmatmul.mubr.f32.gmra.mrb[0].mxu0 %v1972
        %v2113 = vpop.f32.mrb[0].mxu0
        %v2114 = vadd.f32 %v1932, %v2113
        %v2115 = vpop.f32.mrb[0].mxu0
        %2116 = vmatprep.mubr.f32.mxu0 0.0
        %2117 = vmatmul.mubr.f32.gmra.mrb[0].mxu0 %v1975
        %v2118 = vpop.f32.mrb[0].mxu0
        %v2119 = vadd.f32 %v1932, %v2118
        %v2120 = vpop.f32.mrb[0].mxu0
        %2121 = vmatprep.mubr.f32.mxu0 0.0
        %2122 = vmatmul.mubr.f32.gmra.mrb[0].mxu0 %v1978
        %v2123 = vpop.f32.mrb[0].mxu0
        %v2124 = vadd.f32 %v1932, %v2123
        %v2125 = vpop.f32.mrb[0].mxu0
        %2126 = vmatprep.mubr.f32.mxu0 0.0
        %2127 = vmatmul.mubr.f32.gmra.mrb[0].mxu0 %v1981
        %v2128 = vpop.f32.mrb[0].mxu0
        %v2129 = vadd.f32 %v1932, %v2128
        %v2130 = vpop.f32.mrb[0].mxu0
        %2131 = vdwg.mxu0
        %v2132 = vmax.f32 %v2054, 0.0
        %v2133 = vmax.f32 %v2059, 0.0
        %v2134 = vmax.f32 %v2064, 0.0
        %v2135 = vmax.f32 %v2069, 0.0
        %v2136 = vmax.f32 %v2074, 0.0
        %v2137 = vmax.f32 %v2079, 0.0
        %v2138 = vmax.f32 %v2084, 0.0
        %v2139 = vmax.f32 %v2089, 0.0
        %v2140 = vmax.f32 %v2094, 0.0
        %v2141 = vmax.f32 %v2099, 0.0
        %v2142 = vmax.f32 %v2104, 0.0
        %v2143 = vmax.f32 %v2109, 0.0
        %v2144 = vmax.f32 %v2114, 0.0
        %v2145 = vmax.f32 %v2119, 0.0
        %v2146 = vmax.f32 %v2124, 0.0
        %v2147 = vmax.f32 %v2129, 0.0
        %v2148 = vld [vmem:[#allocation15] sm:$0xf]
        %v2149 = vld [vmem:[%s471] sm:$0xff]
        %v2150 = vld [vmem:[%s471 + $0x8] sm:$0xff]
        %v2151 = vld [vmem:[%s471 + $0x10] sm:$0xff]
        %v2152 = vld [vmem:[%s471 + $0x18] sm:$0xff]
        %v2153 = vld [vmem:[%s471 + $0x20] sm:$0xff]
        %v2154 = vld [vmem:[%s471 + $0x28] sm:$0xff]
        %v2155 = vld [vmem:[%s471 + $0x30] sm:$0xff]
        %v2156 = vld [vmem:[%s471 + $0x38] sm:$0xff]
        %v2157 = vld [vmem:[%s471 + $0x40] sm:$0xff]
        %v2158 = vld [vmem:[%s471 + $0x48] sm:$0xff]
        %v2159 = vld [vmem:[%s471 + $0x50] sm:$0xff]
        %v2160 = vld [vmem:[%s471 + $0x58] sm:$0xff]
        %v2161 = vld [vmem:[%s471 + $0x60] sm:$0xff]
        %v2162 = vld [vmem:[%s471 + $0x68] sm:$0xff]
        %v2163 = vld [vmem:[%s471 + $0x70] sm:$0xff]
        %v2164 = vld [vmem:[%s471 + $0x78] sm:$0xff]
        %v2165 = vld [vmem:[#allocation17] sm:$0x1]
        %v2167 = vlaneseq
        %v2168 = vshrl.u32 %v2167, 7
        %v2169 = vsub.s32 0, %v2168
        %v2170 = vrot.slane %v2165, %v2169
        %v2173 = vsel %vm885, %v2132, 0
        %v2176 = vsel %vm885, %v2133, 0
        %v2179 = vsel %vm885, %v2134, 0
        %v2182 = vsel %vm885, %v2135, 0
        %v2185 = vsel %vm885, %v2136, 0
        %v2188 = vsel %vm885, %v2137, 0
        %v2191 = vsel %vm885, %v2138, 0
        %v2194 = vsel %vm885, %v2139, 0
        %v2197 = vsel %vm885, %v2140, 0
        %v2200 = vsel %vm885, %v2141, 0
        %v2203 = vsel %vm885, %v2142, 0
        %v2206 = vsel %vm885, %v2143, 0
        %v2209 = vsel %vm885, %v2144, 0
        %v2212 = vsel %vm885, %v2145, 0
        %v2215 = vsel %vm885, %v2146, 0
        %v2218 = vsel %vm885, %v2147, 0
        %v2221 = vsel %vm1983, %v2148, 0
        %2223 = vmatprep.subr.mxu0 0.0
        %2224 = vmatpush1.msra.mxu0 %v2221
        %2225 = vmatprep.subr.mxu0 0.0
        %2226 = vmatpush1.msra.mxu0 0.0
        %2227 = vmatprep.subr.mxu0 0.0
        %2228 = vmatpush1.msra.mxu0 0.0
        %2229 = vmatprep.subr.mxu0 0.0
        %2230 = vmatpush1.msra.mxu0 0.0
        %2231 = vmatprep.subr.mxu0 0.0
        %2232 = vmatpush1.msra.mxu0 0.0
        %2233 = vmatprep.subr.mxu0 0.0
        %2234 = vmatpush1.msra.mxu0 0.0
        %2235 = vmatprep.subr.mxu0 0.0
        %2236 = vmatpush1.msra.mxu0 0.0
        %2237 = vmatprep.subr.mxu0 0.0
        %2238 = vmatpush1.msra.mxu0 0.0
        %2239 = vmatprep.subr.mxu0 0.0
        %2240 = vmatpush1.msra.mxu0 0.0
        %2241 = vmatprep.subr.mxu0 0.0
        %2242 = vmatpush1.msra.mxu0 0.0
        %2243 = vmatprep.subr.mxu0 0.0
        %2244 = vmatpush1.msra.mxu0 0.0
        %2245 = vmatprep.subr.mxu0 0.0
        %2246 = vmatpush1.msra.mxu0 0.0
        %2247 = vmatprep.subr.mxu0 0.0
        %2248 = vmatpush1.msra.mxu0 0.0
        %2249 = vmatprep.subr.mxu0 0.0
        %2250 = vmatpush1.msra.mxu0 0.0
        %2251 = vmatprep.subr.mxu0 0.0
        %2252 = vmatpush1.msra.mxu0 0.0
        %2253 = vmatprep.subr.mxu0 0.0
        %2254 = vmatpush1.msra.mxu0 0.0
        %2255 = vmatprep.subr.mxu0 0.0
        %2256 = vmatpush1.msra.mxu0 0.0
        %2257 = vmatprep.subr.mxu0 0.0
        %2258 = vmatpush1.msra.mxu0 0.0
        %2259 = vmatprep.subr.mxu0 0.0
        %2260 = vmatpush1.msra.mxu0 0.0
        %2261 = vmatprep.subr.mxu0 0.0
        %2262 = vmatpush1.msra.mxu0 0.0
        %2263 = vmatprep.subr.mxu0 0.0
        %2264 = vmatpush1.msra.mxu0 0.0
        %2265 = vmatprep.subr.mxu0 0.0
        %2266 = vmatpush1.msra.mxu0 0.0
        %2267 = vmatprep.subr.mxu0 0.0
        %2268 = vmatpush1.msra.mxu0 0.0
        %2269 = vmatprep.subr.mxu0 0.0
        %2270 = vmatpush1.msra.mxu0 0.0
        %2271 = vmatprep.subr.mxu0 0.0
        %2272 = vmatpush1.msra.mxu0 0.0
        %2273 = vmatprep.subr.mxu0 0.0
        %2274 = vmatpush1.msra.mxu0 0.0
        %2275 = vmatprep.subr.mxu0 0.0
        %2276 = vmatpush1.msra.mxu0 0.0
        %2277 = vmatprep.subr.mxu0 0.0
        %2278 = vmatpush1.msra.mxu0 0.0
        %2279 = vmatprep.subr.mxu0 0.0
        %2280 = vmatpush1.msra.mxu0 0.0
        %2281 = vmatprep.subr.mxu0 0.0
        %2282 = vmatpush1.msra.mxu0 0.0
        %2283 = vmatprep.subr.mxu0 0.0
        %2284 = vmatpush1.msra.mxu0 0.0
        %2285 = vmatprep.subr.mxu0 0.0
        %2286 = vmatpush1.msra.mxu0 0.0
        %2287 = vmatprep.mubr.f32.mxu0 0.0
        %2288 = vmatmul.mubr.f32.gmra.mrb[0].mxu0 %v2173
        %v2289 = vpop.f32.mrb[0].mxu0
        %v2290 = vadd.f32 %v2170, %v2289
        %v2291 = vpop.f32.mrb[0].mxu0
        %2292 = vmatprep.mubr.f32.mxu0 0.0
        %2293 = vmatmul.mubr.f32.gmra.mrb[0].mxu0 %v2176
        %v2294 = vpop.f32.mrb[0].mxu0
        %v2295 = vadd.f32 %v2170, %v2294
        %v2296 = vpop.f32.mrb[0].mxu0
        %2297 = vmatprep.mubr.f32.mxu0 0.0
        %2298 = vmatmul.mubr.f32.gmra.mrb[0].mxu0 %v2179
        %v2299 = vpop.f32.mrb[0].mxu0
        %v2300 = vadd.f32 %v2170, %v2299
        %v2301 = vpop.f32.mrb[0].mxu0
        %2302 = vmatprep.mubr.f32.mxu0 0.0
        %2303 = vmatmul.mubr.f32.gmra.mrb[0].mxu0 %v2182
        %v2304 = vpop.f32.mrb[0].mxu0
        %v2305 = vadd.f32 %v2170, %v2304
        %v2306 = vpop.f32.mrb[0].mxu0
        %2307 = vmatprep.mubr.f32.mxu0 0.0
        %2308 = vmatmul.mubr.f32.gmra.mrb[0].mxu0 %v2185
        %v2309 = vpop.f32.mrb[0].mxu0
        %v2310 = vadd.f32 %v2170, %v2309
        %v2311 = vpop.f32.mrb[0].mxu0
        %2312 = vmatprep.mubr.f32.mxu0 0.0
        %2313 = vmatmul.mubr.f32.gmra.mrb[0].mxu0 %v2188
        %v2314 = vpop.f32.mrb[0].mxu0
        %v2315 = vadd.f32 %v2170, %v2314
        %v2316 = vpop.f32.mrb[0].mxu0
        %2317 = vmatprep.mubr.f32.mxu0 0.0
        %2318 = vmatmul.mubr.f32.gmra.mrb[0].mxu0 %v2191
        %v2319 = vpop.f32.mrb[0].mxu0
        %v2320 = vadd.f32 %v2170, %v2319
        %v2321 = vpop.f32.mrb[0].mxu0
        %2322 = vmatprep.mubr.f32.mxu0 0.0
        %2323 = vmatmul.mubr.f32.gmra.mrb[0].mxu0 %v2194
        %v2324 = vpop.f32.mrb[0].mxu0
        %v2325 = vadd.f32 %v2170, %v2324
        %v2326 = vpop.f32.mrb[0].mxu0
        %2327 = vmatprep.mubr.f32.mxu0 0.0
        %2328 = vmatmul.mubr.f32.gmra.mrb[0].mxu0 %v2197
        %v2329 = vpop.f32.mrb[0].mxu0
        %v2330 = vadd.f32 %v2170, %v2329
        %v2331 = vpop.f32.mrb[0].mxu0
        %2332 = vmatprep.mubr.f32.mxu0 0.0
        %2333 = vmatmul.mubr.f32.gmra.mrb[0].mxu0 %v2200
        %v2334 = vpop.f32.mrb[0].mxu0
        %v2335 = vadd.f32 %v2170, %v2334
        %v2336 = vpop.f32.mrb[0].mxu0
        %2337 = vmatprep.mubr.f32.mxu0 0.0
        %2338 = vmatmul.mubr.f32.gmra.mrb[0].mxu0 %v2203
        %v2339 = vpop.f32.mrb[0].mxu0
        %v2340 = vadd.f32 %v2170, %v2339
        %v2341 = vpop.f32.mrb[0].mxu0
        %2342 = vmatprep.mubr.f32.mxu0 0.0
        %2343 = vmatmul.mubr.f32.gmra.mrb[0].mxu0 %v2206
        %v2344 = vpop.f32.mrb[0].mxu0
        %v2345 = vadd.f32 %v2170, %v2344
        %v2346 = vpop.f32.mrb[0].mxu0
        %2347 = vmatprep.mubr.f32.mxu0 0.0
        %2348 = vmatmul.mubr.f32.gmra.mrb[0].mxu0 %v2209
        %v2349 = vpop.f32.mrb[0].mxu0
        %v2350 = vadd.f32 %v2170, %v2349
        %v2351 = vpop.f32.mrb[0].mxu0
        %2352 = vmatprep.mubr.f32.mxu0 0.0
        %2353 = vmatmul.mubr.f32.gmra.mrb[0].mxu0 %v2212
        %v2354 = vpop.f32.mrb[0].mxu0
        %v2355 = vadd.f32 %v2170, %v2354
        %v2356 = vpop.f32.mrb[0].mxu0
        %2357 = vmatprep.mubr.f32.mxu0 0.0
        %2358 = vmatmul.mubr.f32.gmra.mrb[0].mxu0 %v2215
        %v2359 = vpop.f32.mrb[0].mxu0
        %v2360 = vadd.f32 %v2170, %v2359
        %v2361 = vpop.f32.mrb[0].mxu0
        %2362 = vmatprep.mubr.f32.mxu0 0.0
        %2363 = vmatmul.mubr.f32.gmra.mrb[0].mxu0 %v2218
        %v2364 = vpop.f32.mrb[0].mxu0
        %v2365 = vadd.f32 %v2170, %v2364
        %v2366 = vpop.f32.mrb[0].mxu0
        %2367 = vdwg.mxu0
        %v2368 = vadd.f32 %v2290, %v2149
        %v2369 = vadd.f32 %v2295, %v2150
        %v2370 = vadd.f32 %v2300, %v2151
        %v2371 = vadd.f32 %v2305, %v2152
        %v2372 = vadd.f32 %v2310, %v2153
        %v2373 = vadd.f32 %v2315, %v2154
        %v2374 = vadd.f32 %v2320, %v2155
        %v2375 = vadd.f32 %v2325, %v2156
        %v2376 = vadd.f32 %v2330, %v2157
        %v2377 = vadd.f32 %v2335, %v2158
        %v2378 = vadd.f32 %v2340, %v2159
        %v2379 = vadd.f32 %v2345, %v2160
        %v2380 = vadd.f32 %v2350, %v2161
        %v2381 = vadd.f32 %v2355, %v2162
        %v2382 = vadd.f32 %v2360, %v2163
        %v2383 = vadd.f32 %v2365, %v2164
        %v2384 = vmax.f32 %v2368, 0.0
        %v2385 = vmax.f32 %v2369, 0.0
        %v2386 = vmax.f32 %v2370, 0.0
        %v2387 = vmax.f32 %v2371, 0.0
        %v2388 = vmax.f32 %v2372, 0.0
        %v2389 = vmax.f32 %v2373, 0.0
        %v2390 = vmax.f32 %v2374, 0.0
        %v2391 = vmax.f32 %v2375, 0.0
        %v2392 = vmax.f32 %v2376, 0.0
        %v2393 = vmax.f32 %v2377, 0.0
        %v2394 = vmax.f32 %v2378, 0.0
        %v2395 = vmax.f32 %v2379, 0.0
        %v2396 = vmax.f32 %v2380, 0.0
        %v2397 = vmax.f32 %v2381, 0.0
        %v2398 = vmax.f32 %v2382, 0.0
        %v2399 = vmax.f32 %v2383, 0.0
        %2400 = vst.msk [vmem:[%s557] sm:$0xff] %vm593, %v2384
        %2401 = vst.msk [vmem:[%s557 + $0x8] sm:$0xff] %vm593, %v2385
        %2402 = vst.msk [vmem:[%s557 + $0x10] sm:$0xff] %vm593, %v2386
        %2403 = vst.msk [vmem:[%s557 + $0x18] sm:$0xff] %vm593, %v2387
        %2404 = vst.msk [vmem:[%s557 + $0x20] sm:$0xff] %vm593, %v2388
        %2405 = vst.msk [vmem:[%s557 + $0x28] sm:$0xff] %vm593, %v2389
        %2406 = vst.msk [vmem:[%s557 + $0x30] sm:$0xff] %vm593, %v2390
        %2407 = vst.msk [vmem:[%s557 + $0x38] sm:$0xff] %vm593, %v2391
        %2408 = vst.msk [vmem:[%s557 + $0x40] sm:$0xff] %vm593, %v2392
        %2409 = vst.msk [vmem:[%s557 + $0x48] sm:$0xff] %vm593, %v2393
        %2410 = vst.msk [vmem:[%s557 + $0x50] sm:$0xff] %vm593, %v2394
        %2411 = vst.msk [vmem:[%s557 + $0x58] sm:$0xff] %vm593, %v2395
        %2412 = vst.msk [vmem:[%s557 + $0x60] sm:$0xff] %vm593, %v2396
        %2413 = vst.msk [vmem:[%s557 + $0x68] sm:$0xff] %vm593, %v2397
        %2414 = vst.msk [vmem:[%s557 + $0x70] sm:$0xff] %vm593, %v2398
        %2415 = vst.msk [vmem:[%s557 + $0x78] sm:$0xff] %vm593, %v2399
        %s2416 = sand.u32 %s280, 1
        %s2417 = scalar_lea.sflag [#allocation5], %s2416
        %s2418 = sand.u32 %s280, 1
        %s2419 = smul.addr %s2418, 128
        %s2420 = scalar_lea.vmem [#allocation18], %s2419
        // Predicated region
        $region109: #{tpu_custom_call.1} parent=55 // pred_check
          %p2421 = pneg %p290
        $region110: #{tpu_custom_call.1} parent=55 // pred_check_branch
          %2423 = sbr.rel (%p2421) target = $region112
        $region111: #{tpu_custom_call.1} parent=55 // pred_region
          %s2424 = smul.u32 8, %s37
          %s2426 = ssub.s32 2048, 2048
          %2427 = vsyncadd %s2417, %s2426
          %s2428 = smul.addr %s2424, 2
          %s2429 = smul.addr %s36, 32
          %s2430 = sadd.s32 %s2428, %s2429
          %s2431 = smul.addr %s2430, 128
          %s2432 = scalar_lea.hbm %s9, %s2431
          %s2433 = sshll.u32 %s2420, 4
          %s2434 = int_to_ptr.vmem [resolvable:$true] %s2433
          %2439 = dma.vmem_to_hbm [thread:$0]  %s2434, 2048, %s2432, %s2417, 128, 128, 8
        $region112: #{tpu_custom_call.1} parent=55 // pred_fallthru
          _
      $region56: #{tpu_custom_call.1} parent=5 // pred_fallthru
        _
      %p2440 = scmp.le.s32.totalorder 2, %s27
      // Predicated region
      $region113: #{tpu_custom_call.1} parent=5 // pred_check
        %p2441 = pneg %p2440
      $region114: #{tpu_custom_call.1} parent=5 // pred_check_branch
        %2443 = sbr.rel (%p2441) target = $region116
      $region115: #{tpu_custom_call.1} parent=5 // pred_region
        %s2444 = ssub.s32 %s27, 2
        // Predicated region
        $region117: #{tpu_custom_call.1} parent=115 // pred_check
          %p2445 = pneg %p296
        $region118: #{tpu_custom_call.1} parent=115 // pred_check_branch
          %2447 = sbr.rel (%p2445) target = $region120
        $region119: #{tpu_custom_call.1} parent=115 // pred_region
          %s2448 = sand.u32 %s281, 1
          %s2449 = scalar_lea.sflag [#allocation5], %s2448
          %s2450 = sand.u32 %s281, 1
          %s2451 = smul.addr %s2450, 128
          %s2452 = scalar_lea.vmem [#allocation18], %s2451
          %2453 = dma.done %s2449, 2048
        $region120: #{tpu_custom_call.1} parent=115 // pred_fallthru
          _
      $region116: #{tpu_custom_call.1} parent=5 // pred_fallthru
        _
    $region6: #{tpu_custom_call.1} parent=1 // loop_footer
      %s31 = sadd.s32 1, %s27
    $region7: #{tpu_custom_call.1} parent=1 // loop_footer_branch
      %26 = sbr.rel target = $region3
    $region8: #{tpu_custom_call.1} parent=1 // loop_exit
      _
    %2454 = vsyncpa [#allocation4], 1
    %s2455 = scalar_lea.sflag [#allocation4], 1
    %2456 = vsyncpa %s2455, 1
    %2457 = vsyncpa [#allocation7], 1
    %s2458 = scalar_lea.sflag [#allocation7], 1
    %2459 = vsyncpa %s2458, 1
    %2460 = vsyncpa [#allocation10], 1
    %2461 = vsyncpa [#allocation13], 1
    %2462 = vsyncpa [#allocation16], 1
    %2463 = vsyncpa [#allocation5], 1
    %s2464 = scalar_lea.sflag [#allocation5], 1
    %2465 = vsyncpa %s2464, 1

</llo_original>
